<compile_context>
chip_gen: v7x
topology: tpu7x:2x2x1
jax: 0.10.0
libtpu: 0.0.40
codegen_flags: <defaults>
</compile_context>

<pallas_src>
import jax
import jax.numpy as jnp
from jax import lax
from jax.experimental import pallas as pl
from jax.experimental.pallas import tpu as pltpu


def e2e_kernel(x_ref, w1t_ref, w2p_ref, o_ref):
    # x_ref:   (Nb, C, d, d)  activations in natural layout (no wrapper transpose)
    # w1t_ref: (C, d, P)      w1t[c, j, p] = cnn1.weight[p, c, 0, j]
    # w2p_ref: (C, P, d)      w2p[c, p, i] = cnn2.weight[p, c, i, 0]
    # o_ref:   (Nb, P, d, d)  out[n, p, i, j] = a[n, p, i] + b[n, p, j]
    nb = x_ref.shape[0]
    C = x_ref.shape[1]
    P = o_ref.shape[1]

    # Weights are tiny and identical for every batch element: load once per step.
    w1t = w1t_ref[...]                       # (C, d, P)
    w2p = w2p_ref[...]                       # (C, P, d)

    def body(n, carry):
        # Static channel loop (C is small).  Both conv terms are small MXU dots
        # directly on x[n, c]: 'a' contracts the lane axis (j), 'bT' contracts
        # the sublane axis (i) -> no in-kernel transposes, no x_col view.
        xc = x_ref[n, 0, :, :]                                         # (d, d)
        a = jnp.dot(xc, w1t[0], preferred_element_type=jnp.float32)    # (d, P)  a[i, p]
        bT = jnp.dot(w2p[0], xc, preferred_element_type=jnp.float32)   # (P, d)  b[p, j]
        for c in range(1, C):
            xc = x_ref[n, c, :, :]
            a = a + jnp.dot(xc, w1t[c], preferred_element_type=jnp.float32)
            bT = bT + jnp.dot(w2p[c], xc, preferred_element_type=jnp.float32)

        # Per-p slab epilogue: a[:, p] is already sublane-aligned (column of a),
        # bT[p, :] is already lane-aligned (row of bT) -> both are cheap
        # broadcasts, live set stays ~12 vregs instead of a full (P, d, d) temp.
        for p in range(P):
            slab = a[:, p:p + 1] + bT[p:p + 1, :]                       # (d, d)
            o_ref[n, p, :, :] = slab.astype(o_ref.dtype)
        return carry

    lax.fori_loop(0, nb, body, None, unroll=True)


def e2e_block(x, w1, w2, *, block_n=None):
    """x: (N, C, d, d), w1/w2: (P, C, d) (squeezed Conv2d weights) -> (N, P, d, d)."""
    N, C, d, d2 = x.shape
    assert d == d2, "E2EBlock expects square (d, d) spatial input"
    P = w1.shape[0]

    # Only the tiny weights get a wrapper-side relayout (negligible traffic).
    w1t = jnp.transpose(w1, (1, 2, 0))        # (C, d, P): [c, j, p]
    w2p = jnp.transpose(w2, (1, 0, 2))        # (C, P, d): [c, p, i]

    if block_n is None:
        # Aim for ~4 grid steps (>= 2 whenever N >= 2): gives the pipeline
        # something to double-buffer and lets both v7x TensorCores work.
        # Keep block_n an exact divisor of N and <= 8.
        max_blk = max(1, N // 4) if N >= 4 else 1
        block_n = 1
        for cand in range(min(max_blk, 8), 0, -1):
            if N % cand == 0:
                block_n = cand
                break
    grid = (pl.cdiv(N, block_n),)

    flops = int(4 * N * C * P * d * d) + int(N * P * d * d)
    bytes_accessed = int((N * C * d * d + 2 * C * d * P + N * P * d * d) * 4)

    return pl.pallas_call(
        e2e_kernel,
        out_shape=jax.ShapeDtypeStruct((N, P, d, d), x.dtype),
        grid_spec=pltpu.PrefetchScalarGridSpec(
            num_scalar_prefetch=0,
            grid=grid,
            in_specs=[
                pl.BlockSpec((block_n, C, d, d), lambda n: (n, 0, 0, 0)),
                pl.BlockSpec((C, d, P), lambda n: (0, 0, 0)),
                pl.BlockSpec((C, P, d), lambda n: (0, 0, 0)),
            ],
            out_specs=pl.BlockSpec((block_n, P, d, d), lambda n: (n, 0, 0, 0)),
        ),
        compiler_params=pltpu.CompilerParams(
            dimension_semantics=("parallel",)),
        cost_estimate=pl.CostEstimate(
            flops=flops, transcendentals=0, bytes_accessed=bytes_accessed),
    )(x, w1t, w2p)


if __name__ == "__main__":
    # d is hard-coded to 90 in the PyTorch module (self.d = 90); the forward
    # only makes sense when the spatial dims of x are (90, 90).
    N, C, P, d = 2, 4, 4, 90
    key = jax.random.PRNGKey(0)
    kx, k1, k2 = jax.random.split(key, 3)

    x = jax.random.normal(kx, (N, C, d, d), dtype=jnp.float32)

    # Deterministic synthetic Conv2d weights (bias=False):
    #   cnn1.weight: (P, C, 1, d), cnn2.weight: (P, C, d, 1)
    fan_in = float(C * d)
    w1_4d = jax.random.uniform(k1, (P, C, 1, d), jnp.float32, -1.0, 1.0) / jnp.sqrt(fan_in)
    w2_4d = jax.random.uniform(k2, (P, C, d, 1), jnp.float32, -1.0, 1.0) / jnp.sqrt(fan_in)
    w1 = w1_4d[:, :, 0, :]            # (P, C, d)
    w2 = w2_4d[:, :, :, 0]            # (P, C, d)

    e2e = jax.jit(e2e_block)
    out = jax.block_until_ready(e2e(x, w1, w2))

    # Pure-JAX reference (same math as the PyTorch forward).
    a_ref = jnp.einsum('ncij,pcj->npi', x, w1)          # cnn1 squeezed
    b_ref = jnp.einsum('ncij,pci->npj', x, w2)          # cnn2 squeezed
    ref = a_ref[:, :, :, None] + b_ref[:, :, None, :]   # (N, P, d, d)

    assert out.shape == (N, P, d, d), out.shape
    assert jnp.allclose(out, ref, atol=1e-3, rtol=1e-3)
    print("KERNEL_OK")
</pallas_src>

<mosaic_0001>
module attributes {stable_mosaic.version = 11 : i64} {
  func.func @e2e_kernel(%arg0: i32, %arg1: memref<1x4x90x90xf32, #tpu.memory_space<vmem>>, %arg2: memref<4x90x4xf32, #tpu.memory_space<vmem>>, %arg3: memref<4x4x90xf32, #tpu.memory_space<vmem>>, %arg4: memref<1x4x90x90xf32, #tpu.memory_space<vmem>>) attributes {dimension_semantics = [#tpu.dimension_semantics<parallel>], iteration_bounds = array<i64: 2>, scalar_prefetch = 0 : i64, scratch_operands = 0 : i64, tpu.core_type = #tpu.core_type<tc>, window_params = [{transform_indices = @transform_0, window_bounds = array<i64: 1, 4, 90, 90>}, {pipeline_mode = #tpu.pipeline_mode<synchronous>, transform_indices = @transform_1, window_bounds = array<i64: 4, 90, 4>}, {pipeline_mode = #tpu.pipeline_mode<synchronous>, transform_indices = @transform_2, window_bounds = array<i64: 4, 4, 90>}, {transform_indices = @transform_3, window_bounds = array<i64: 1, 4, 90, 90>}]} {
    %c0 = arith.constant 0 : index
    %c0_0 = arith.constant 0 : index
    %c0_1 = arith.constant 0 : index
    %0 = vector.load %arg2[%c0, %c0_0, %c0_1] : memref<4x90x4xf32, #tpu.memory_space<vmem>>, vector<4x90x4xf32>
    %c0_2 = arith.constant 0 : index
    %c0_3 = arith.constant 0 : index
    %c0_4 = arith.constant 0 : index
    %1 = vector.load %arg3[%c0_2, %c0_3, %c0_4] : memref<4x4x90xf32, #tpu.memory_space<vmem>>, vector<4x4x90xf32>
    %c0_i32 = arith.constant 0 : i32
    %2 = arith.index_cast %c0_i32 : i32 to index
    %c0_5 = arith.constant 0 : index
    %c0_6 = arith.constant 0 : index
    %c0_7 = arith.constant 0 : index
    %3 = vector.load %arg1[%2, %c0_5, %c0_6, %c0_7] : memref<1x4x90x90xf32, #tpu.memory_space<vmem>>, vector<1x1x90x90xf32>
    %4 = vector.shape_cast %3 : vector<1x1x90x90xf32> to vector<90x90xf32>
    %5 = vector.extract_strided_slice %0 {offsets = [0, 0, 0], sizes = [1, 90, 4], strides = [1, 1, 1]} : vector<4x90x4xf32> to vector<1x90x4xf32>
    %6 = vector.shape_cast %5 : vector<1x90x4xf32> to vector<90x4xf32>
    %cst = arith.constant dense<0.000000e+00> : vector<90x4xf32>
    %7 = tpu.matmul %4, %6, %cst {dimension_numbers = #tpu.dot_dimension_numbers<[1], [0], [0], [1], [0, 0, 1, 1], [], []>} : vector<90x90xf32>, vector<90x4xf32>, vector<90x4xf32> -> vector<90x4xf32>
    %8 = vector.extract_strided_slice %1 {offsets = [0, 0, 0], sizes = [1, 4, 90], strides = [1, 1, 1]} : vector<4x4x90xf32> to vector<1x4x90xf32>
    %9 = vector.shape_cast %8 : vector<1x4x90xf32> to vector<4x90xf32>
    %cst_8 = arith.constant dense<0.000000e+00> : vector<4x90xf32>
    %10 = tpu.matmul %9, %4, %cst_8 {dimension_numbers = #tpu.dot_dimension_numbers<[1], [0], [0], [1], [0, 0, 1, 1], [], []>} : vector<4x90xf32>, vector<90x90xf32>, vector<4x90xf32> -> vector<4x90xf32>
    %11 = arith.index_cast %c0_i32 : i32 to index
    %c1 = arith.constant 1 : index
    %c0_9 = arith.constant 0 : index
    %c0_10 = arith.constant 0 : index
    %12 = vector.load %arg1[%11, %c1, %c0_9, %c0_10] : memref<1x4x90x90xf32, #tpu.memory_space<vmem>>, vector<1x1x90x90xf32>
    %13 = vector.shape_cast %12 : vector<1x1x90x90xf32> to vector<90x90xf32>
    %14 = vector.extract_strided_slice %0 {offsets = [1, 0, 0], sizes = [1, 90, 4], strides = [1, 1, 1]} : vector<4x90x4xf32> to vector<1x90x4xf32>
    %15 = vector.shape_cast %14 : vector<1x90x4xf32> to vector<90x4xf32>
    %cst_11 = arith.constant dense<0.000000e+00> : vector<90x4xf32>
    %16 = tpu.matmul %13, %15, %cst_11 {dimension_numbers = #tpu.dot_dimension_numbers<[1], [0], [0], [1], [0, 0, 1, 1], [], []>} : vector<90x90xf32>, vector<90x4xf32>, vector<90x4xf32> -> vector<90x4xf32>
    %17 = arith.addf %7, %16 : vector<90x4xf32>
    %18 = vector.extract_strided_slice %1 {offsets = [1, 0, 0], sizes = [1, 4, 90], strides = [1, 1, 1]} : vector<4x4x90xf32> to vector<1x4x90xf32>
    %19 = vector.shape_cast %18 : vector<1x4x90xf32> to vector<4x90xf32>
    %cst_12 = arith.constant dense<0.000000e+00> : vector<4x90xf32>
    %20 = tpu.matmul %19, %13, %cst_12 {dimension_numbers = #tpu.dot_dimension_numbers<[1], [0], [0], [1], [0, 0, 1, 1], [], []>} : vector<4x90xf32>, vector<90x90xf32>, vector<4x90xf32> -> vector<4x90xf32>
    %21 = arith.addf %10, %20 : vector<4x90xf32>
    %22 = arith.index_cast %c0_i32 : i32 to index
    %c2 = arith.constant 2 : index
    %c0_13 = arith.constant 0 : index
    %c0_14 = arith.constant 0 : index
    %23 = vector.load %arg1[%22, %c2, %c0_13, %c0_14] : memref<1x4x90x90xf32, #tpu.memory_space<vmem>>, vector<1x1x90x90xf32>
    %24 = vector.shape_cast %23 : vector<1x1x90x90xf32> to vector<90x90xf32>
    %25 = vector.extract_strided_slice %0 {offsets = [2, 0, 0], sizes = [1, 90, 4], strides = [1, 1, 1]} : vector<4x90x4xf32> to vector<1x90x4xf32>
    %26 = vector.shape_cast %25 : vector<1x90x4xf32> to vector<90x4xf32>
    %cst_15 = arith.constant dense<0.000000e+00> : vector<90x4xf32>
    %27 = tpu.matmul %24, %26, %cst_15 {dimension_numbers = #tpu.dot_dimension_numbers<[1], [0], [0], [1], [0, 0, 1, 1], [], []>} : vector<90x90xf32>, vector<90x4xf32>, vector<90x4xf32> -> vector<90x4xf32>
    %28 = arith.addf %17, %27 : vector<90x4xf32>
    %29 = vector.extract_strided_slice %1 {offsets = [2, 0, 0], sizes = [1, 4, 90], strides = [1, 1, 1]} : vector<4x4x90xf32> to vector<1x4x90xf32>
    %30 = vector.shape_cast %29 : vector<1x4x90xf32> to vector<4x90xf32>
    %cst_16 = arith.constant dense<0.000000e+00> : vector<4x90xf32>
    %31 = tpu.matmul %30, %24, %cst_16 {dimension_numbers = #tpu.dot_dimension_numbers<[1], [0], [0], [1], [0, 0, 1, 1], [], []>} : vector<4x90xf32>, vector<90x90xf32>, vector<4x90xf32> -> vector<4x90xf32>
    %32 = arith.addf %21, %31 : vector<4x90xf32>
    %33 = arith.index_cast %c0_i32 : i32 to index
    %c3 = arith.constant 3 : index
    %c0_17 = arith.constant 0 : index
    %c0_18 = arith.constant 0 : index
    %34 = vector.load %arg1[%33, %c3, %c0_17, %c0_18] : memref<1x4x90x90xf32, #tpu.memory_space<vmem>>, vector<1x1x90x90xf32>
    %35 = vector.shape_cast %34 : vector<1x1x90x90xf32> to vector<90x90xf32>
    %36 = vector.extract_strided_slice %0 {offsets = [3, 0, 0], sizes = [1, 90, 4], strides = [1, 1, 1]} : vector<4x90x4xf32> to vector<1x90x4xf32>
    %37 = vector.shape_cast %36 : vector<1x90x4xf32> to vector<90x4xf32>
    %cst_19 = arith.constant dense<0.000000e+00> : vector<90x4xf32>
    %38 = tpu.matmul %35, %37, %cst_19 {dimension_numbers = #tpu.dot_dimension_numbers<[1], [0], [0], [1], [0, 0, 1, 1], [], []>} : vector<90x90xf32>, vector<90x4xf32>, vector<90x4xf32> -> vector<90x4xf32>
    %39 = arith.addf %28, %38 : vector<90x4xf32>
    %40 = vector.extract_strided_slice %1 {offsets = [3, 0, 0], sizes = [1, 4, 90], strides = [1, 1, 1]} : vector<4x4x90xf32> to vector<1x4x90xf32>
    %41 = vector.shape_cast %40 : vector<1x4x90xf32> to vector<4x90xf32>
    %cst_20 = arith.constant dense<0.000000e+00> : vector<4x90xf32>
    %42 = tpu.matmul %41, %35, %cst_20 {dimension_numbers = #tpu.dot_dimension_numbers<[1], [0], [0], [1], [0, 0, 1, 1], [], []>} : vector<4x90xf32>, vector<90x90xf32>, vector<4x90xf32> -> vector<4x90xf32>
    %43 = arith.addf %32, %42 : vector<4x90xf32>
    %44 = vector.extract_strided_slice %39 {offsets = [0, 0], sizes = [90, 1], strides = [1, 1]} : vector<90x4xf32> to vector<90x1xf32>
    %45 = vector.extract_strided_slice %43 {offsets = [0, 0], sizes = [1, 90], strides = [1, 1]} : vector<4x90xf32> to vector<1x90xf32>
    %46 = vector.broadcast %44 : vector<90x1xf32> to vector<90x90xf32>
    %47 = vector.broadcast %45 : vector<1x90xf32> to vector<90x90xf32>
    %48 = arith.addf %46, %47 : vector<90x90xf32>
    %49 = arith.index_cast %c0_i32 : i32 to index
    %c0_21 = arith.constant 0 : index
    %c0_22 = arith.constant 0 : index
    %c0_23 = arith.constant 0 : index
    %50 = vector.load %arg4[%49, %c0_21, %c0_22, %c0_23] : memref<1x4x90x90xf32, #tpu.memory_space<vmem>>, vector<1x1x90x90xf32>
    %51 = vector.shape_cast %50 : vector<1x1x90x90xf32> to vector<90x90xf32>
    %52 = vector.shape_cast %48 : vector<90x90xf32> to vector<1x1x90x90xf32>
    tpu.vector_store %arg4[%49, %c0_21, %c0_22, %c0_23], %52 {strides = array<i32>} : memref<1x4x90x90xf32, #tpu.memory_space<vmem>>, vector<1x1x90x90xf32>,
    %53 = vector.extract_strided_slice %39 {offsets = [0, 1], sizes = [90, 1], strides = [1, 1]} : vector<90x4xf32> to vector<90x1xf32>
    %54 = vector.extract_strided_slice %43 {offsets = [1, 0], sizes = [1, 90], strides = [1, 1]} : vector<4x90xf32> to vector<1x90xf32>
    %55 = vector.broadcast %53 : vector<90x1xf32> to vector<90x90xf32>
    %56 = vector.broadcast %54 : vector<1x90xf32> to vector<90x90xf32>
    %57 = arith.addf %55, %56 : vector<90x90xf32>
    %58 = arith.index_cast %c0_i32 : i32 to index
    %c1_24 = arith.constant 1 : index
    %c0_25 = arith.constant 0 : index
    %c0_26 = arith.constant 0 : index
    %59 = vector.load %arg4[%58, %c1_24, %c0_25, %c0_26] : memref<1x4x90x90xf32, #tpu.memory_space<vmem>>, vector<1x1x90x90xf32>
    %60 = vector.shape_cast %59 : vector<1x1x90x90xf32> to vector<90x90xf32>
    %61 = vector.shape_cast %57 : vector<90x90xf32> to vector<1x1x90x90xf32>
    tpu.vector_store %arg4[%58, %c1_24, %c0_25, %c0_26], %61 {strides = array<i32>} : memref<1x4x90x90xf32, #tpu.memory_space<vmem>>, vector<1x1x90x90xf32>,
    %62 = vector.extract_strided_slice %39 {offsets = [0, 2], sizes = [90, 1], strides = [1, 1]} : vector<90x4xf32> to vector<90x1xf32>
    %63 = vector.extract_strided_slice %43 {offsets = [2, 0], sizes = [1, 90], strides = [1, 1]} : vector<4x90xf32> to vector<1x90xf32>
    %64 = vector.broadcast %62 : vector<90x1xf32> to vector<90x90xf32>
    %65 = vector.broadcast %63 : vector<1x90xf32> to vector<90x90xf32>
    %66 = arith.addf %64, %65 : vector<90x90xf32>
    %67 = arith.index_cast %c0_i32 : i32 to index
    %c2_27 = arith.constant 2 : index
    %c0_28 = arith.constant 0 : index
    %c0_29 = arith.constant 0 : index
    %68 = vector.load %arg4[%67, %c2_27, %c0_28, %c0_29] : memref<1x4x90x90xf32, #tpu.memory_space<vmem>>, vector<1x1x90x90xf32>
    %69 = vector.shape_cast %68 : vector<1x1x90x90xf32> to vector<90x90xf32>
    %70 = vector.shape_cast %66 : vector<90x90xf32> to vector<1x1x90x90xf32>
    tpu.vector_store %arg4[%67, %c2_27, %c0_28, %c0_29], %70 {strides = array<i32>} : memref<1x4x90x90xf32, #tpu.memory_space<vmem>>, vector<1x1x90x90xf32>,
    %71 = vector.extract_strided_slice %39 {offsets = [0, 3], sizes = [90, 1], strides = [1, 1]} : vector<90x4xf32> to vector<90x1xf32>
    %72 = vector.extract_strided_slice %43 {offsets = [3, 0], sizes = [1, 90], strides = [1, 1]} : vector<4x90xf32> to vector<1x90xf32>
    %73 = vector.broadcast %71 : vector<90x1xf32> to vector<90x90xf32>
    %74 = vector.broadcast %72 : vector<1x90xf32> to vector<90x90xf32>
    %75 = arith.addf %73, %74 : vector<90x90xf32>
    %76 = arith.index_cast %c0_i32 : i32 to index
    %c3_30 = arith.constant 3 : index
    %c0_31 = arith.constant 0 : index
    %c0_32 = arith.constant 0 : index
    %77 = vector.load %arg4[%76, %c3_30, %c0_31, %c0_32] : memref<1x4x90x90xf32, #tpu.memory_space<vmem>>, vector<1x1x90x90xf32>
    %78 = vector.shape_cast %77 : vector<1x1x90x90xf32> to vector<90x90xf32>
    %79 = vector.shape_cast %75 : vector<90x90xf32> to vector<1x1x90x90xf32>
    tpu.vector_store %arg4[%76, %c3_30, %c0_31, %c0_32], %79 {strides = array<i32>} : memref<1x4x90x90xf32, #tpu.memory_space<vmem>>, vector<1x1x90x90xf32>,
    %c1_i32 = arith.constant 1 : i32
    return
  }
  func.func @transform_0(%arg0: i32) -> (i32, i32, i32, i32) {
    %c0_i32 = arith.constant 0 : i32
    %c0_i32_0 = arith.constant 0 : i32
    %c0_i32_1 = arith.constant 0 : i32
    %c0_i32_2 = arith.constant 0 : i32
    return %arg0, %c0_i32, %c0_i32_0, %c0_i32_1 : i32, i32, i32, i32
  }
  func.func @transform_1(%arg0: i32) -> (i32, i32, i32) {
    %c0_i32 = arith.constant 0 : i32
    %c0_i32_0 = arith.constant 0 : i32
    %c0_i32_1 = arith.constant 0 : i32
    %c0_i32_2 = arith.constant 0 : i32
    return %c0_i32, %c0_i32_0, %c0_i32_1 : i32, i32, i32
  }
  func.func @transform_2(%arg0: i32) -> (i32, i32, i32) {
    %c0_i32 = arith.constant 0 : i32
    %c0_i32_0 = arith.constant 0 : i32
    %c0_i32_1 = arith.constant 0 : i32
    %c0_i32_2 = arith.constant 0 : i32
    return %c0_i32, %c0_i32_0, %c0_i32_1 : i32, i32, i32
  }
  func.func @transform_3(%arg0: i32) -> (i32, i32, i32, i32) {
    %c0_i32 = arith.constant 0 : i32
    %c0_i32_0 = arith.constant 0 : i32
    %c0_i32_1 = arith.constant 0 : i32
    %c0_i32_2 = arith.constant 0 : i32
    return %arg0, %c0_i32, %c0_i32_0, %c0_i32_1 : i32, i32, i32, i32
  }
}

</mosaic_0001>

<llo_original>
// kernel: e2e_block.1
$region0: #{e2e_block.1}
  #allocation0 [shape = 'u32[]', space=smem, size = 0x4, offset = 0x4, fixed_abs, tag = 'smem constant byte address 0x4 - core index']
  #allocation1 [shape = 'u32[144,128]{1,0:T(1,128)}', space=vmem, size = 0x12000, scoped, tag = 'internal scratch']
  %s0 = inlined_call_operand.vmem [shape: f32[2,4,90,90], index: 0, kind: input, shape index: {}]
  %s1 = inlined_call_operand.vmem [shape: f32[4,90,4], index: 1, kind: input, shape index: {}]
  %s2 = inlined_call_operand.vmem [shape: f32[4,4,90], index: 2, kind: input, shape index: {}]
  %s3 = inlined_call_operand.vmem [shape: f32[2,4,90,90], index: 3, kind: output, shape index: {}]
  %s4 = sld [smem:[#allocation0]]
  $region45: #{e2e_block.1} parent=0
    _
  %s6 = ssub.s32 1, %s4
  %s7 = scalar_select 0, %s6, %s4
  loop: start=0, step=1, limit=4
  $region2: #{e2e_block.1} parent=0 // loop_pre_header
    _
  $region3: #{e2e_block.1} parent=0 // loop_header
    %s9 = sphi 0, %s13
    %p10 = scmp.ge.s32.totalorder %s9, 4
    %s19 = sphi 0, %s21
    %s22 = sphi 0, %s19
    %s23 = sphi 0, %s22
    %s39 = sphi 0, %s23
    %s43 = sphi 0, %s43
    %s45 = sphi 0, %s43
    %s46 = sphi 0, %s45
    %s60 = sphi 0, %s46
    %s64 = sphi 0, %s64
    %s66 = sphi 0, %s64
    %s67 = sphi 0, %s66
    %s81 = sphi 0, %s67
    %s87 = sphi 0, %s89
    %s90 = sphi 0, %s87
    %s91 = sphi 0, %s90
    %s107 = sphi 0, %s91
  $region4: #{e2e_block.1} parent=0 // loop_header_branch
    %12 = sbr.rel (%p10) target = $region8
  $region5: #{e2e_block.1} parent=0 // loop_body
    %s14 = ssub.s32 %s9, 1
    %s15 = ssub.s32 %s9, 2
    %s16 = sadd.s32 %s9, 1
    %s17 = ssub.s32 %s9, %s16
    %p18 = scmp.eq.s32.totalorder %s17, 0
    %s20 = sadd.s32 %s19, 1
    %s21 = scalar_select %p18, %s19, %s20
    %p24 = pneg %p18
    %p25 = scmp.eq.s32.totalorder %s9, 1
    %p26 = por %p24, %p25
    %p27 = scmp.ne.s32.totalorder %s19, %s22
    %p28 = scmp.eq.s32.totalorder %s9, 0
    %p29 = por %p27, %p28
    %p30 = scmp.ne.s32.totalorder %s19, %s22
    %p31 = scmp.eq.s32.totalorder %s14, 1
    %p32 = por %p30, %p31
    %p33 = scmp.ne.s32.totalorder %s22, %s23
    %p34 = scmp.eq.s32.totalorder %s14, 0
    %p35 = por %p33, %p34
    %p36 = scmp.ne.s32.totalorder %s22, %s23
    %p37 = scmp.eq.s32.totalorder %s15, 1
    %p38 = por %p36, %p37
    %p40 = scmp.ne.s32.totalorder %s23, %s39
    %p41 = scmp.eq.s32.totalorder %s15, 0
    %p42 = por %p40, %p41
    %s44 = sadd.s32 %s43, 1
    %p47 = scmp.eq.s32.totalorder %s9, 1
    %p48 = scmp.ne.s32.totalorder %s43, %s45
    %p49 = scmp.eq.s32.totalorder %s9, 0
    %p50 = por %p48, %p49
    %p51 = scmp.ne.s32.totalorder %s43, %s45
    %p52 = scmp.eq.s32.totalorder %s14, 1
    %p53 = por %p51, %p52
    %p54 = scmp.ne.s32.totalorder %s45, %s46
    %p55 = scmp.eq.s32.totalorder %s14, 0
    %p56 = por %p54, %p55
    %p57 = scmp.ne.s32.totalorder %s45, %s46
    %p58 = scmp.eq.s32.totalorder %s15, 1
    %p59 = por %p57, %p58
    %p61 = scmp.ne.s32.totalorder %s46, %s60
    %p62 = scmp.eq.s32.totalorder %s15, 0
    %p63 = por %p61, %p62
    %s65 = sadd.s32 %s64, 1
    %p68 = scmp.eq.s32.totalorder %s9, 1
    %p69 = scmp.ne.s32.totalorder %s64, %s66
    %p70 = scmp.eq.s32.totalorder %s9, 0
    %p71 = por %p69, %p70
    %p72 = scmp.ne.s32.totalorder %s64, %s66
    %p73 = scmp.eq.s32.totalorder %s14, 1
    %p74 = por %p72, %p73
    %p75 = scmp.ne.s32.totalorder %s66, %s67
    %p76 = scmp.eq.s32.totalorder %s14, 0
    %p77 = por %p75, %p76
    %p78 = scmp.ne.s32.totalorder %s66, %s67
    %p79 = scmp.eq.s32.totalorder %s15, 1
    %p80 = por %p78, %p79
    %p82 = scmp.ne.s32.totalorder %s67, %s81
    %p83 = scmp.eq.s32.totalorder %s15, 0
    %p84 = por %p82, %p83
    %s85 = ssub.s32 %s9, %s16
    %p86 = scmp.eq.s32.totalorder %s85, 0
    %s88 = sadd.s32 %s87, 1
    %s89 = scalar_select %p86, %s87, %s88
    %p92 = pneg %p86
    %p93 = scmp.eq.s32.totalorder %s9, 1
    %p94 = por %p92, %p93
    %p95 = scmp.ne.s32.totalorder %s87, %s90
    %p96 = scmp.eq.s32.totalorder %s9, 0
    %p97 = por %p95, %p96
    %p98 = scmp.ne.s32.totalorder %s87, %s90
    %p99 = scmp.eq.s32.totalorder %s14, 1
    %p100 = por %p98, %p99
    %p101 = scmp.ne.s32.totalorder %s90, %s91
    %p102 = scmp.eq.s32.totalorder %s14, 0
    %p103 = por %p101, %p102
    %p104 = scmp.ne.s32.totalorder %s90, %s91
    %p105 = scmp.eq.s32.totalorder %s15, 1
    %p106 = por %p104, %p105
    %p108 = scmp.ne.s32.totalorder %s91, %s107
    %p109 = scmp.eq.s32.totalorder %s15, 0
    %p110 = por %p108, %p109
    %p111 = scmp.le.s32.totalorder 1, %s9
    %p112 = scmp.lt.s32.totalorder %s9, 3
    %p113 = pnand %p111, %p112
    %p114 = pneg %p113
    // Predicated region
    $region9: #{e2e_block.1} parent=5 // pred_check
      _
    $region10: #{e2e_block.1} parent=5 // pred_check_branch
      %116 = sbr.rel (%p113) target = $region12
    $region11: #{e2e_block.1} parent=5 // pred_region
      %s117 = ssub.s32 %s9, 1
      // Predicated region
      $region13: #{e2e_block.1} parent=11 // pred_check
        %p118 = pneg %p56
      $region14: #{e2e_block.1} parent=11 // pred_check_branch
        %120 = sbr.rel (%p118) target = $region16
      $region15: #{e2e_block.1} parent=11 // pred_region
        _
      $region16: #{e2e_block.1} parent=11 // pred_fallthru
        _
      // Predicated region
      $region17: #{e2e_block.1} parent=11 // pred_check
        %p121 = pneg %p77
      $region18: #{e2e_block.1} parent=11 // pred_check_branch
        %123 = sbr.rel (%p121) target = $region20
      $region19: #{e2e_block.1} parent=11 // pred_region
        _
      $region20: #{e2e_block.1} parent=11 // pred_fallthru
        _
    $region12: #{e2e_block.1} parent=5 // pred_fallthru
      _
    %p124 = scmp.lt.s32.totalorder %s9, 2
    // Predicated region
    $region21: #{e2e_block.1} parent=5 // pred_check
      %p125 = pneg %p124
    $region22: #{e2e_block.1} parent=5 // pred_check_branch
      %127 = sbr.rel (%p125) target = $region24
    $region23: #{e2e_block.1} parent=5 // pred_region
      // Predicated region
      $region25: #{e2e_block.1} parent=23 // pred_check
        %p128 = pneg %p29
      $region26: #{e2e_block.1} parent=23 // pred_check_branch
        %130 = sbr.rel (%p128) target = $region28
      $region27: #{e2e_block.1} parent=23 // pred_region
        %p131 = scmp.lt.s32.totalorder %s9, 1
        %s132 = scalar_select %p131, %s9, 1
        %s133 = smul.addr %s132, 48
        %s134 = smul.addr %s133, 8
        %s135 = scalar_lea.vmem %s0, %s134
      $region28: #{e2e_block.1} parent=23 // pred_fallthru
        _
    $region24: #{e2e_block.1} parent=5 // pred_fallthru
      _
    %p136 = scmp.le.s32.totalorder 1, %s9
    %p137 = scmp.lt.s32.totalorder %s9, 3
    %p138 = pnand %p136, %p137
    %p139 = pneg %p138
    // Predicated region
    $region29: #{e2e_block.1} parent=5 // pred_check
      _
    $region30: #{e2e_block.1} parent=5 // pred_check_branch
      %141 = sbr.rel (%p138) target = $region32
    $region31: #{e2e_block.1} parent=5 // pred_region
      %s142 = ssub.s32 %s9, 1
      %p143 = scmp.lt.s32.totalorder %s14, 1
      %s144 = scalar_select %p143, %s14, 1
      %s145 = smul.addr %s144, 48
      %s146 = smul.addr %s145, 8
      %s147 = scalar_lea.vmem %s0, %s146
      %p148 = pneg %p35
      %p149 = pneg %p32
      %p150 = pneg %p56
      %p151 = pneg %p53
      %p152 = pneg %p77
      %p153 = pneg %p74
      %p154 = pneg %p103
      %p155 = pneg %p100
      %p156 = scmp.lt.s32.totalorder %s14, 1
      %s157 = scalar_select %p156, %s14, 1
      %s158 = smul.addr %s157, 48
      %s159 = smul.addr %s158, 8
      %s160 = scalar_lea.vmem %s3, %s159
      %p161 = scmp.lt.s32.totalorder %s14, 1
      %s162 = scalar_select %p161, %s14, 1
      %s163 = smul.addr %s162, 48
      %s164 = smul.addr %s163, 8
      %s165 = scalar_lea.vmem %s0, %s164
      %p166 = scmp.lt.s32.totalorder %s14, 1
      %s167 = scalar_select %p166, %s14, 1
      %s168 = smul.addr %s167, 48
      %s169 = smul.addr %s168, 8
      %s170 = scalar_lea.vmem %s3, %s169
      %v171 = vld [vmem:[%s1] sm:$0xff]
      %v172 = vld [vmem:[%s1 + $0x8] sm:$0xff]
      %v173 = vld [vmem:[%s1 + $0x10] sm:$0xff]
      %v174 = vld [vmem:[%s1 + $0x18] sm:$0xff]
      %v175 = vld [vmem:[%s1 + $0x20] sm:$0xff]
      %v176 = vld [vmem:[%s1 + $0x28] sm:$0xff]
      %v177 = vld [vmem:[%s1 + $0x30] sm:$0xff]
      %v178 = vld [vmem:[%s1 + $0x38] sm:$0xff]
      %v179 = vld [vmem:[%s1 + $0x40] sm:$0xff]
      %v180 = vld [vmem:[%s1 + $0x48] sm:$0xff]
      %v181 = vld [vmem:[%s1 + $0x50] sm:$0xff]
      %v182 = vld [vmem:[%s1 + $0x58] sm:$0x3]
      %v183 = vld [vmem:[%s1 + $0x60] sm:$0xff]
      %v184 = vld [vmem:[%s1 + $0x68] sm:$0xff]
      %v185 = vld [vmem:[%s1 + $0x70] sm:$0xff]
      %v186 = vld [vmem:[%s1 + $0x78] sm:$0xff]
      %v187 = vld [vmem:[%s1 + $0x80] sm:$0xff]
      %v188 = vld [vmem:[%s1 + $0x88] sm:$0xff]
      %v189 = vld [vmem:[%s1 + $0x90] sm:$0xff]
      %v190 = vld [vmem:[%s1 + $0x98] sm:$0xff]
      %v191 = vld [vmem:[%s1 + $0xa0] sm:$0xff]
      %v192 = vld [vmem:[%s1 + $0xa8] sm:$0xff]
      %v193 = vld [vmem:[%s1 + $0xb0] sm:$0xff]
      %v194 = vld [vmem:[%s1 + $0xb8] sm:$0x3]
      %v195 = vld [vmem:[%s1 + $0xc0] sm:$0xff]
      %v196 = vld [vmem:[%s1 + $0xc8] sm:$0xff]
      %v197 = vld [vmem:[%s1 + $0xd0] sm:$0xff]
      %v198 = vld [vmem:[%s1 + $0xd8] sm:$0xff]
      %v199 = vld [vmem:[%s1 + $0xe0] sm:$0xff]
      %v200 = vld [vmem:[%s1 + $0xe8] sm:$0xff]
      %v201 = vld [vmem:[%s1 + $0xf0] sm:$0xff]
      %v202 = vld [vmem:[%s1 + $0xf8] sm:$0xff]
      %v203 = vld [vmem:[%s1 + $0x100] sm:$0xff]
      %v204 = vld [vmem:[%s1 + $0x108] sm:$0xff]
      %v205 = vld [vmem:[%s1 + $0x110] sm:$0xff]
      %v206 = vld [vmem:[%s1 + $0x118] sm:$0x3]
      %v207 = vld [vmem:[%s1 + $0x120] sm:$0xff]
      %v208 = vld [vmem:[%s1 + $0x128] sm:$0xff]
      %v209 = vld [vmem:[%s1 + $0x130] sm:$0xff]
      %v210 = vld [vmem:[%s1 + $0x138] sm:$0xff]
      %v211 = vld [vmem:[%s1 + $0x140] sm:$0xff]
      %v212 = vld [vmem:[%s1 + $0x148] sm:$0xff]
      %v213 = vld [vmem:[%s1 + $0x150] sm:$0xff]
      %v214 = vld [vmem:[%s1 + $0x158] sm:$0xff]
      %v215 = vld [vmem:[%s1 + $0x160] sm:$0xff]
      %v216 = vld [vmem:[%s1 + $0x168] sm:$0xff]
      %v217 = vld [vmem:[%s1 + $0x170] sm:$0xff]
      %v218 = vld [vmem:[%s1 + $0x178] sm:$0x3]
      %v219 = vld [vmem:[%s2] sm:$0xf]
      %v220 = vld [vmem:[%s2 + $0x4] sm:$0xf]
      %v221 = vld [vmem:[%s2 + $0x8] sm:$0xf]
      %v222 = vld [vmem:[%s2 + $0xc] sm:$0xf]
      %v223 = vld [vmem:[%s165] sm:$0xff]
      %v224 = vld [vmem:[%s165 + $0x8] sm:$0xff]
      %v225 = vld [vmem:[%s165 + $0x10] sm:$0xff]
      %v226 = vld [vmem:[%s165 + $0x18] sm:$0xff]
      %v227 = vld [vmem:[%s165 + $0x20] sm:$0xff]
      %v228 = vld [vmem:[%s165 + $0x28] sm:$0xff]
      %v229 = vld [vmem:[%s165 + $0x30] sm:$0xff]
      %v230 = vld [vmem:[%s165 + $0x38] sm:$0xff]
      %v231 = vld [vmem:[%s165 + $0x40] sm:$0xff]
      %v232 = vld [vmem:[%s165 + $0x48] sm:$0xff]
      %v233 = vld [vmem:[%s165 + $0x50] sm:$0xff]
      %v234 = vld [vmem:[%s165 + $0x58] sm:$0x3]
      %s235 = scalar_lea.vmem %s165, 96
      %v236 = vld [vmem:[%s235] sm:$0xff]
      %v237 = vld [vmem:[%s235 + $0x8] sm:$0xff]
      %v238 = vld [vmem:[%s235 + $0x10] sm:$0xff]
      %v239 = vld [vmem:[%s235 + $0x18] sm:$0xff]
      %v240 = vld [vmem:[%s235 + $0x20] sm:$0xff]
      %v241 = vld [vmem:[%s235 + $0x28] sm:$0xff]
      %v242 = vld [vmem:[%s235 + $0x30] sm:$0xff]
      %v243 = vld [vmem:[%s235 + $0x38] sm:$0xff]
      %v244 = vld [vmem:[%s235 + $0x40] sm:$0xff]
      %v245 = vld [vmem:[%s235 + $0x48] sm:$0xff]
      %v246 = vld [vmem:[%s235 + $0x50] sm:$0xff]
      %v247 = vld [vmem:[%s235 + $0x58] sm:$0x3]
      %vm248 = vcmask 736256
      %v250 = vsel %vm248, %v236, 0
      %v253 = vsel %vm248, %v237, 0
      %v256 = vsel %vm248, %v238, 0
      %v259 = vsel %vm248, %v239, 0
      %v262 = vsel %vm248, %v240, 0
      %v265 = vsel %vm248, %v241, 0
      %v268 = vsel %vm248, %v242, 0
      %v271 = vsel %vm248, %v243, 0
      %v274 = vsel %vm248, %v244, 0
      %v277 = vsel %vm248, %v245, 0
      %v280 = vsel %vm248, %v246, 0
      %v283 = vsel %vm248, %v247, 0
      %vm285 = vcmask 1041408
      %v287 = vsel %vm285, %v194, 0
      %289 = vmatprep.subr.mxu0 0.0
      %290 = vmatpush1.msra.mxu0 %v183
      %291 = vmatprep.subr.mxu0 0.0
      %292 = vmatpush1.msra.mxu0 %v184
      %293 = vmatprep.subr.mxu0 0.0
      %294 = vmatpush1.msra.mxu0 %v185
      %295 = vmatprep.subr.mxu0 0.0
      %296 = vmatpush1.msra.mxu0 %v186
      %297 = vmatprep.subr.mxu0 0.0
      %298 = vmatpush1.msra.mxu0 %v187
      %299 = vmatprep.subr.mxu0 0.0
      %300 = vmatpush1.msra.mxu0 %v188
      %301 = vmatprep.subr.mxu0 0.0
      %302 = vmatpush1.msra.mxu0 %v189
      %303 = vmatprep.subr.mxu0 0.0
      %304 = vmatpush1.msra.mxu0 %v190
      %305 = vmatprep.subr.mxu0 0.0
      %306 = vmatpush1.msra.mxu0 %v191
      %307 = vmatprep.subr.mxu0 0.0
      %308 = vmatpush1.msra.mxu0 %v192
      %309 = vmatprep.subr.mxu0 0.0
      %310 = vmatpush1.msra.mxu0 %v193
      %311 = vmatprep.subr.mxu0 0.0
      %312 = vmatpush1.msra.mxu0 %v287
      %313 = vmatprep.subr.mxu0 0.0
      %314 = vmatpush1.msra.mxu0 0.0
      %315 = vmatprep.subr.mxu0 0.0
      %316 = vmatpush1.msra.mxu0 0.0
      %317 = vmatprep.subr.mxu0 0.0
      %318 = vmatpush1.msra.mxu0 0.0
      %319 = vmatprep.subr.mxu0 0.0
      %320 = vmatpush1.msra.mxu0 0.0
      %321 = vmatprep.subr.mxu0 0.0
      %322 = vmatpush1.msra.mxu0 0.0
      %323 = vmatprep.subr.mxu0 0.0
      %324 = vmatpush1.msra.mxu0 0.0
      %325 = vmatprep.subr.mxu0 0.0
      %326 = vmatpush1.msra.mxu0 0.0
      %327 = vmatprep.subr.mxu0 0.0
      %328 = vmatpush1.msra.mxu0 0.0
      %329 = vmatprep.subr.mxu0 0.0
      %330 = vmatpush1.msra.mxu0 0.0
      %331 = vmatprep.subr.mxu0 0.0
      %332 = vmatpush1.msra.mxu0 0.0
      %333 = vmatprep.subr.mxu0 0.0
      %334 = vmatpush1.msra.mxu0 0.0
      %335 = vmatprep.subr.mxu0 0.0
      %336 = vmatpush1.msra.mxu0 0.0
      %337 = vmatprep.subr.mxu0 0.0
      %338 = vmatpush1.msra.mxu0 0.0
      %339 = vmatprep.subr.mxu0 0.0
      %340 = vmatpush1.msra.mxu0 0.0
      %341 = vmatprep.subr.mxu0 0.0
      %342 = vmatpush1.msra.mxu0 0.0
      %343 = vmatprep.subr.mxu0 0.0
      %344 = vmatpush1.msra.mxu0 0.0
      %345 = vmatprep.subr.mxu0 0.0
      %346 = vmatpush1.msra.mxu0 0.0
      %347 = vmatprep.subr.mxu0 0.0
      %348 = vmatpush1.msra.mxu0 0.0
      %349 = vmatprep.subr.mxu0 0.0
      %350 = vmatpush1.msra.mxu0 0.0
      %351 = vmatprep.subr.mxu0 0.0
      %352 = vmatpush1.msra.mxu0 0.0
      %353 = vmatprep.mubr.f32.mxu0 0.0
      %354 = vmatmul.mubr.f32.gmra.mrb[0].mxu0 %v250
      %v355 = vpop.f32.mrb[0].mxu0
      %v356 = vadd.f32 0.0, %v355
      %v357 = vpop.f32.mrb[0].mxu0
      %358 = vmatprep.mubr.f32.mxu0 0.0
      %359 = vmatmul.mubr.f32.gmra.mrb[0].mxu0 %v253
      %v360 = vpop.f32.mrb[0].mxu0
      %v361 = vadd.f32 0.0, %v360
      %v362 = vpop.f32.mrb[0].mxu0
      %363 = vmatprep.mubr.f32.mxu0 0.0
      %364 = vmatmul.mubr.f32.gmra.mrb[0].mxu0 %v256
      %v365 = vpop.f32.mrb[0].mxu0
      %v366 = vadd.f32 0.0, %v365
      %v367 = vpop.f32.mrb[0].mxu0
      %368 = vmatprep.mubr.f32.mxu0 0.0
      %369 = vmatmul.mubr.f32.gmra.mrb[0].mxu0 %v259
      %v370 = vpop.f32.mrb[0].mxu0
      %v371 = vadd.f32 0.0, %v370
      %v372 = vpop.f32.mrb[0].mxu0
      %373 = vmatprep.mubr.f32.mxu0 0.0
      %374 = vmatmul.mubr.f32.gmra.mrb[0].mxu0 %v262
      %v375 = vpop.f32.mrb[0].mxu0
      %v376 = vadd.f32 0.0, %v375
      %v377 = vpop.f32.mrb[0].mxu0
      %378 = vmatprep.mubr.f32.mxu0 0.0
      %379 = vmatmul.mubr.f32.gmra.mrb[0].mxu0 %v265
      %v380 = vpop.f32.mrb[0].mxu0
      %v381 = vadd.f32 0.0, %v380
      %v382 = vpop.f32.mrb[0].mxu0
      %383 = vmatprep.mubr.f32.mxu0 0.0
      %384 = vmatmul.mubr.f32.gmra.mrb[0].mxu0 %v268
      %v385 = vpop.f32.mrb[0].mxu0
      %v386 = vadd.f32 0.0, %v385
      %v387 = vpop.f32.mrb[0].mxu0
      %388 = vmatprep.mubr.f32.mxu0 0.0
      %389 = vmatmul.mubr.f32.gmra.mrb[0].mxu0 %v271
      %v390 = vpop.f32.mrb[0].mxu0
      %v391 = vadd.f32 0.0, %v390
      %v392 = vpop.f32.mrb[0].mxu0
      %393 = vmatprep.mubr.f32.mxu0 0.0
      %394 = vmatmul.mubr.f32.gmra.mrb[0].mxu0 %v274
      %v395 = vpop.f32.mrb[0].mxu0
      %v396 = vadd.f32 0.0, %v395
      %v397 = vpop.f32.mrb[0].mxu0
      %398 = vmatprep.mubr.f32.mxu0 0.0
      %399 = vmatmul.mubr.f32.gmra.mrb[0].mxu0 %v277
      %v400 = vpop.f32.mrb[0].mxu0
      %v401 = vadd.f32 0.0, %v400
      %v402 = vpop.f32.mrb[0].mxu0
      %403 = vmatprep.mubr.f32.mxu0 0.0
      %404 = vmatmul.mubr.f32.gmra.mrb[0].mxu0 %v280
      %v405 = vpop.f32.mrb[0].mxu0
      %v406 = vadd.f32 0.0, %v405
      %v407 = vpop.f32.mrb[0].mxu0
      %408 = vmatprep.mubr.f32.mxu0 0.0
      %409 = vmatmul.mubr.f32.gmra.mrb[0].mxu0 %v283
      %v410 = vpop.f32.mrb[0].mxu0
      %v411 = vadd.f32 0.0, %v410
      %v412 = vpop.f32.mrb[0].mxu0
      %413 = vdwg.mxu0
      %v415 = vsel %vm248, %v223, 0
      %v418 = vsel %vm248, %v224, 0
      %v421 = vsel %vm248, %v225, 0
      %v424 = vsel %vm248, %v226, 0
      %v427 = vsel %vm248, %v227, 0
      %v430 = vsel %vm248, %v228, 0
      %v433 = vsel %vm248, %v229, 0
      %v436 = vsel %vm248, %v230, 0
      %v439 = vsel %vm248, %v231, 0
      %v442 = vsel %vm248, %v232, 0
      %v445 = vsel %vm248, %v233, 0
      %v448 = vsel %vm248, %v234, 0
      %v451 = vsel %vm285, %v182, 0
      %453 = vmatprep.subr.mxu0 0.0
      %454 = vmatpush1.msra.mxu0 %v171
      %455 = vmatprep.subr.mxu0 0.0
      %456 = vmatpush1.msra.mxu0 %v172
      %457 = vmatprep.subr.mxu0 0.0
      %458 = vmatpush1.msra.mxu0 %v173
      %459 = vmatprep.subr.mxu0 0.0
      %460 = vmatpush1.msra.mxu0 %v174
      %461 = vmatprep.subr.mxu0 0.0
      %462 = vmatpush1.msra.mxu0 %v175
      %463 = vmatprep.subr.mxu0 0.0
      %464 = vmatpush1.msra.mxu0 %v176
      %465 = vmatprep.subr.mxu0 0.0
      %466 = vmatpush1.msra.mxu0 %v177
      %467 = vmatprep.subr.mxu0 0.0
      %468 = vmatpush1.msra.mxu0 %v178
      %469 = vmatprep.subr.mxu0 0.0
      %470 = vmatpush1.msra.mxu0 %v179
      %471 = vmatprep.subr.mxu0 0.0
      %472 = vmatpush1.msra.mxu0 %v180
      %473 = vmatprep.subr.mxu0 0.0
      %474 = vmatpush1.msra.mxu0 %v181
      %475 = vmatprep.subr.mxu0 0.0
      %476 = vmatpush1.msra.mxu0 %v451
      %477 = vmatprep.subr.mxu0 0.0
      %478 = vmatpush1.msra.mxu0 0.0
      %479 = vmatprep.subr.mxu0 0.0
      %480 = vmatpush1.msra.mxu0 0.0
      %481 = vmatprep.subr.mxu0 0.0
      %482 = vmatpush1.msra.mxu0 0.0
      %483 = vmatprep.subr.mxu0 0.0
      %484 = vmatpush1.msra.mxu0 0.0
      %485 = vmatprep.subr.mxu0 0.0
      %486 = vmatpush1.msra.mxu0 0.0
      %487 = vmatprep.subr.mxu0 0.0
      %488 = vmatpush1.msra.mxu0 0.0
      %489 = vmatprep.subr.mxu0 0.0
      %490 = vmatpush1.msra.mxu0 0.0
      %491 = vmatprep.subr.mxu0 0.0
      %492 = vmatpush1.msra.mxu0 0.0
      %493 = vmatprep.subr.mxu0 0.0
      %494 = vmatpush1.msra.mxu0 0.0
      %495 = vmatprep.subr.mxu0 0.0
      %496 = vmatpush1.msra.mxu0 0.0
      %497 = vmatprep.subr.mxu0 0.0
      %498 = vmatpush1.msra.mxu0 0.0
      %499 = vmatprep.subr.mxu0 0.0
      %500 = vmatpush1.msra.mxu0 0.0
      %501 = vmatprep.subr.mxu0 0.0
      %502 = vmatpush1.msra.mxu0 0.0
      %503 = vmatprep.subr.mxu0 0.0
      %504 = vmatpush1.msra.mxu0 0.0
      %505 = vmatprep.subr.mxu0 0.0
      %506 = vmatpush1.msra.mxu0 0.0
      %507 = vmatprep.subr.mxu0 0.0
      %508 = vmatpush1.msra.mxu0 0.0
      %509 = vmatprep.subr.mxu0 0.0
      %510 = vmatpush1.msra.mxu0 0.0
      %511 = vmatprep.subr.mxu0 0.0
      %512 = vmatpush1.msra.mxu0 0.0
      %513 = vmatprep.subr.mxu0 0.0
      %514 = vmatpush1.msra.mxu0 0.0
      %515 = vmatprep.subr.mxu0 0.0
      %516 = vmatpush1.msra.mxu0 0.0
      %517 = vmatprep.mubr.f32.mxu0 0.0
      %518 = vmatmul.mubr.f32.gmra.mrb[0].mxu0 %v415
      %v519 = vpop.f32.mrb[0].mxu0
      %v520 = vadd.f32 %v356, %v519
      %v521 = vpop.f32.mrb[0].mxu0
      %522 = vmatprep.mubr.f32.mxu0 0.0
      %523 = vmatmul.mubr.f32.gmra.mrb[0].mxu0 %v418
      %v524 = vpop.f32.mrb[0].mxu0
      %v525 = vadd.f32 %v361, %v524
      %v526 = vpop.f32.mrb[0].mxu0
      %527 = vmatprep.mubr.f32.mxu0 0.0
      %528 = vmatmul.mubr.f32.gmra.mrb[0].mxu0 %v421
      %v529 = vpop.f32.mrb[0].mxu0
      %v530 = vadd.f32 %v366, %v529
      %v531 = vpop.f32.mrb[0].mxu0
      %532 = vmatprep.mubr.f32.mxu0 0.0
      %533 = vmatmul.mubr.f32.gmra.mrb[0].mxu0 %v424
      %v534 = vpop.f32.mrb[0].mxu0
      %v535 = vadd.f32 %v371, %v534
      %v536 = vpop.f32.mrb[0].mxu0
      %537 = vmatprep.mubr.f32.mxu0 0.0
      %538 = vmatmul.mubr.f32.gmra.mrb[0].mxu0 %v427
      %v539 = vpop.f32.mrb[0].mxu0
      %v540 = vadd.f32 %v376, %v539
      %v541 = vpop.f32.mrb[0].mxu0
      %542 = vmatprep.mubr.f32.mxu0 0.0
      %543 = vmatmul.mubr.f32.gmra.mrb[0].mxu0 %v430
      %v544 = vpop.f32.mrb[0].mxu0
      %v545 = vadd.f32 %v381, %v544
      %v546 = vpop.f32.mrb[0].mxu0
      %547 = vmatprep.mubr.f32.mxu0 0.0
      %548 = vmatmul.mubr.f32.gmra.mrb[0].mxu0 %v433
      %v549 = vpop.f32.mrb[0].mxu0
      %v550 = vadd.f32 %v386, %v549
      %v551 = vpop.f32.mrb[0].mxu0
      %552 = vmatprep.mubr.f32.mxu0 0.0
      %553 = vmatmul.mubr.f32.gmra.mrb[0].mxu0 %v436
      %v554 = vpop.f32.mrb[0].mxu0
      %v555 = vadd.f32 %v391, %v554
      %v556 = vpop.f32.mrb[0].mxu0
      %557 = vmatprep.mubr.f32.mxu0 0.0
      %558 = vmatmul.mubr.f32.gmra.mrb[0].mxu0 %v439
      %v559 = vpop.f32.mrb[0].mxu0
      %v560 = vadd.f32 %v396, %v559
      %v561 = vpop.f32.mrb[0].mxu0
      %562 = vmatprep.mubr.f32.mxu0 0.0
      %563 = vmatmul.mubr.f32.gmra.mrb[0].mxu0 %v442
      %v564 = vpop.f32.mrb[0].mxu0
      %v565 = vadd.f32 %v401, %v564
      %v566 = vpop.f32.mrb[0].mxu0
      %567 = vmatprep.mubr.f32.mxu0 0.0
      %568 = vmatmul.mubr.f32.gmra.mrb[0].mxu0 %v445
      %v569 = vpop.f32.mrb[0].mxu0
      %v570 = vadd.f32 %v406, %v569
      %v571 = vpop.f32.mrb[0].mxu0
      %572 = vmatprep.mubr.f32.mxu0 0.0
      %573 = vmatmul.mubr.f32.gmra.mrb[0].mxu0 %v448
      %v574 = vpop.f32.mrb[0].mxu0
      %v575 = vadd.f32 %v411, %v574
      %v576 = vpop.f32.mrb[0].mxu0
      %577 = vdwg.mxu0
      %v579 = vsel %vm248, %v220, 0
      %v581 = vsel %vm285, %v247, 0
      %583 = vmatprep.subr.mxu0 0.0
      %584 = vmatpush1.msra.mxu0 %v236
      %585 = vmatprep.subr.mxu0 0.0
      %586 = vmatpush1.msra.mxu0 %v237
      %587 = vmatprep.subr.mxu0 0.0
      %588 = vmatpush1.msra.mxu0 %v238
      %589 = vmatprep.subr.mxu0 0.0
      %590 = vmatpush1.msra.mxu0 %v239
      %591 = vmatprep.subr.mxu0 0.0
      %592 = vmatpush1.msra.mxu0 %v240
      %593 = vmatprep.subr.mxu0 0.0
      %594 = vmatpush1.msra.mxu0 %v241
      %595 = vmatprep.subr.mxu0 0.0
      %596 = vmatpush1.msra.mxu0 %v242
      %597 = vmatprep.subr.mxu0 0.0
      %598 = vmatpush1.msra.mxu0 %v243
      %599 = vmatprep.subr.mxu0 0.0
      %600 = vmatpush1.msra.mxu0 %v244
      %601 = vmatprep.subr.mxu0 0.0
      %602 = vmatpush1.msra.mxu0 %v245
      %603 = vmatprep.subr.mxu0 0.0
      %604 = vmatpush1.msra.mxu0 %v246
      %605 = vmatprep.subr.mxu0 0.0
      %606 = vmatpush1.msra.mxu0 %v581
      %607 = vmatprep.subr.mxu0 0.0
      %608 = vmatpush1.msra.mxu0 0.0
      %609 = vmatprep.subr.mxu0 0.0
      %610 = vmatpush1.msra.mxu0 0.0
      %611 = vmatprep.subr.mxu0 0.0
      %612 = vmatpush1.msra.mxu0 0.0
      %613 = vmatprep.subr.mxu0 0.0
      %614 = vmatpush1.msra.mxu0 0.0
      %615 = vmatprep.subr.mxu0 0.0
      %616 = vmatpush1.msra.mxu0 0.0
      %617 = vmatprep.subr.mxu0 0.0
      %618 = vmatpush1.msra.mxu0 0.0
      %619 = vmatprep.subr.mxu0 0.0
      %620 = vmatpush1.msra.mxu0 0.0
      %621 = vmatprep.subr.mxu0 0.0
      %622 = vmatpush1.msra.mxu0 0.0
      %623 = vmatprep.subr.mxu0 0.0
      %624 = vmatpush1.msra.mxu0 0.0
      %625 = vmatprep.subr.mxu0 0.0
      %626 = vmatpush1.msra.mxu0 0.0
      %627 = vmatprep.subr.mxu0 0.0
      %628 = vmatpush1.msra.mxu0 0.0
      %629 = vmatprep.subr.mxu0 0.0
      %630 = vmatpush1.msra.mxu0 0.0
      %631 = vmatprep.subr.mxu0 0.0
      %632 = vmatpush1.msra.mxu0 0.0
      %633 = vmatprep.subr.mxu0 0.0
      %634 = vmatpush1.msra.mxu0 0.0
      %635 = vmatprep.subr.mxu0 0.0
      %636 = vmatpush1.msra.mxu0 0.0
      %637 = vmatprep.subr.mxu0 0.0
      %638 = vmatpush1.msra.mxu0 0.0
      %639 = vmatprep.subr.mxu0 0.0
      %640 = vmatpush1.msra.mxu0 0.0
      %641 = vmatprep.subr.mxu0 0.0
      %642 = vmatpush1.msra.mxu0 0.0
      %643 = vmatprep.subr.mxu0 0.0
      %644 = vmatpush1.msra.mxu0 0.0
      %645 = vmatprep.subr.mxu0 0.0
      %646 = vmatpush1.msra.mxu0 0.0
      %647 = vmatprep.mubr.f32.mxu0 0.0
      %648 = vmatmul.mubr.f32.gmra.mrb[0].mxu0 %v579
      %v649 = vpop.f32.mrb[0].mxu0
      %v650 = vadd.f32 0.0, %v649
      %v651 = vpop.f32.mrb[0].mxu0
      %652 = vdwg.mxu0
      %v654 = vsel %vm248, %v219, 0
      %v656 = vsel %vm285, %v234, 0
      %658 = vmatprep.subr.mxu0 0.0
      %659 = vmatpush1.msra.mxu0 %v223
      %660 = vmatprep.subr.mxu0 0.0
      %661 = vmatpush1.msra.mxu0 %v224
      %662 = vmatprep.subr.mxu0 0.0
      %663 = vmatpush1.msra.mxu0 %v225
      %664 = vmatprep.subr.mxu0 0.0
      %665 = vmatpush1.msra.mxu0 %v226
      %666 = vmatprep.subr.mxu0 0.0
      %667 = vmatpush1.msra.mxu0 %v227
      %668 = vmatprep.subr.mxu0 0.0
      %669 = vmatpush1.msra.mxu0 %v228
      %670 = vmatprep.subr.mxu0 0.0
      %671 = vmatpush1.msra.mxu0 %v229
      %672 = vmatprep.subr.mxu0 0.0
      %673 = vmatpush1.msra.mxu0 %v230
      %674 = vmatprep.subr.mxu0 0.0
      %675 = vmatpush1.msra.mxu0 %v231
      %676 = vmatprep.subr.mxu0 0.0
      %677 = vmatpush1.msra.mxu0 %v232
      %678 = vmatprep.subr.mxu0 0.0
      %679 = vmatpush1.msra.mxu0 %v233
      %680 = vmatprep.subr.mxu0 0.0
      %681 = vmatpush1.msra.mxu0 %v656
      %682 = vmatprep.subr.mxu0 0.0
      %683 = vmatpush1.msra.mxu0 0.0
      %684 = vmatprep.subr.mxu0 0.0
      %685 = vmatpush1.msra.mxu0 0.0
      %686 = vmatprep.subr.mxu0 0.0
      %687 = vmatpush1.msra.mxu0 0.0
      %688 = vmatprep.subr.mxu0 0.0
      %689 = vmatpush1.msra.mxu0 0.0
      %690 = vmatprep.subr.mxu0 0.0
      %691 = vmatpush1.msra.mxu0 0.0
      %692 = vmatprep.subr.mxu0 0.0
      %693 = vmatpush1.msra.mxu0 0.0
      %694 = vmatprep.subr.mxu0 0.0
      %695 = vmatpush1.msra.mxu0 0.0
      %696 = vmatprep.subr.mxu0 0.0
      %697 = vmatpush1.msra.mxu0 0.0
      %698 = vmatprep.subr.mxu0 0.0
      %699 = vmatpush1.msra.mxu0 0.0
      %700 = vmatprep.subr.mxu0 0.0
      %701 = vmatpush1.msra.mxu0 0.0
      %702 = vmatprep.subr.mxu0 0.0
      %703 = vmatpush1.msra.mxu0 0.0
      %704 = vmatprep.subr.mxu0 0.0
      %705 = vmatpush1.msra.mxu0 0.0
      %706 = vmatprep.subr.mxu0 0.0
      %707 = vmatpush1.msra.mxu0 0.0
      %708 = vmatprep.subr.mxu0 0.0
      %709 = vmatpush1.msra.mxu0 0.0
      %710 = vmatprep.subr.mxu0 0.0
      %711 = vmatpush1.msra.mxu0 0.0
      %712 = vmatprep.subr.mxu0 0.0
      %713 = vmatpush1.msra.mxu0 0.0
      %714 = vmatprep.subr.mxu0 0.0
      %715 = vmatpush1.msra.mxu0 0.0
      %716 = vmatprep.subr.mxu0 0.0
      %717 = vmatpush1.msra.mxu0 0.0
      %718 = vmatprep.subr.mxu0 0.0
      %719 = vmatpush1.msra.mxu0 0.0
      %720 = vmatprep.subr.mxu0 0.0
      %721 = vmatpush1.msra.mxu0 0.0
      %722 = vmatprep.mubr.f32.mxu0 0.0
      %723 = vmatmul.mubr.f32.gmra.mrb[0].mxu0 %v654
      %v724 = vpop.f32.mrb[0].mxu0
      %v725 = vadd.f32 %v650, %v724
      %v726 = vpop.f32.mrb[0].mxu0
      %727 = vdwg.mxu0
      %s728 = scalar_lea.vmem %s165, 192
      %v729 = vld [vmem:[%s728] sm:$0xff]
      %v730 = vld [vmem:[%s728 + $0x8] sm:$0xff]
      %v731 = vld [vmem:[%s728 + $0x10] sm:$0xff]
      %v732 = vld [vmem:[%s728 + $0x18] sm:$0xff]
      %v733 = vld [vmem:[%s728 + $0x20] sm:$0xff]
      %v734 = vld [vmem:[%s728 + $0x28] sm:$0xff]
      %v735 = vld [vmem:[%s728 + $0x30] sm:$0xff]
      %v736 = vld [vmem:[%s728 + $0x38] sm:$0xff]
      %v737 = vld [vmem:[%s728 + $0x40] sm:$0xff]
      %v738 = vld [vmem:[%s728 + $0x48] sm:$0xff]
      %v739 = vld [vmem:[%s728 + $0x50] sm:$0xff]
      %v740 = vld [vmem:[%s728 + $0x58] sm:$0x3]
      %v742 = vsel %vm248, %v729, 0
      %v745 = vsel %vm248, %v730, 0
      %v748 = vsel %vm248, %v731, 0
      %v751 = vsel %vm248, %v732, 0
      %v754 = vsel %vm248, %v733, 0
      %v757 = vsel %vm248, %v734, 0
      %v760 = vsel %vm248, %v735, 0
      %v763 = vsel %vm248, %v736, 0
      %v766 = vsel %vm248, %v737, 0
      %v769 = vsel %vm248, %v738, 0
      %v772 = vsel %vm248, %v739, 0
      %v775 = vsel %vm248, %v740, 0
      %v778 = vsel %vm285, %v206, 0
      %780 = vmatprep.subr.mxu0 0.0
      %781 = vmatpush1.msra.mxu0 %v195
      %782 = vmatprep.subr.mxu0 0.0
      %783 = vmatpush1.msra.mxu0 %v196
      %784 = vmatprep.subr.mxu0 0.0
      %785 = vmatpush1.msra.mxu0 %v197
      %786 = vmatprep.subr.mxu0 0.0
      %787 = vmatpush1.msra.mxu0 %v198
      %788 = vmatprep.subr.mxu0 0.0
      %789 = vmatpush1.msra.mxu0 %v199
      %790 = vmatprep.subr.mxu0 0.0
      %791 = vmatpush1.msra.mxu0 %v200
      %792 = vmatprep.subr.mxu0 0.0
      %793 = vmatpush1.msra.mxu0 %v201
      %794 = vmatprep.subr.mxu0 0.0
      %795 = vmatpush1.msra.mxu0 %v202
      %796 = vmatprep.subr.mxu0 0.0
      %797 = vmatpush1.msra.mxu0 %v203
      %798 = vmatprep.subr.mxu0 0.0
      %799 = vmatpush1.msra.mxu0 %v204
      %800 = vmatprep.subr.mxu0 0.0
      %801 = vmatpush1.msra.mxu0 %v205
      %802 = vmatprep.subr.mxu0 0.0
      %803 = vmatpush1.msra.mxu0 %v778
      %804 = vmatprep.subr.mxu0 0.0
      %805 = vmatpush1.msra.mxu0 0.0
      %806 = vmatprep.subr.mxu0 0.0
      %807 = vmatpush1.msra.mxu0 0.0
      %808 = vmatprep.subr.mxu0 0.0
      %809 = vmatpush1.msra.mxu0 0.0
      %810 = vmatprep.subr.mxu0 0.0
      %811 = vmatpush1.msra.mxu0 0.0
      %812 = vmatprep.subr.mxu0 0.0
      %813 = vmatpush1.msra.mxu0 0.0
      %814 = vmatprep.subr.mxu0 0.0
      %815 = vmatpush1.msra.mxu0 0.0
      %816 = vmatprep.subr.mxu0 0.0
      %817 = vmatpush1.msra.mxu0 0.0
      %818 = vmatprep.subr.mxu0 0.0
      %819 = vmatpush1.msra.mxu0 0.0
      %820 = vmatprep.subr.mxu0 0.0
      %821 = vmatpush1.msra.mxu0 0.0
      %822 = vmatprep.subr.mxu0 0.0
      %823 = vmatpush1.msra.mxu0 0.0
      %824 = vmatprep.subr.mxu0 0.0
      %825 = vmatpush1.msra.mxu0 0.0
      %826 = vmatprep.subr.mxu0 0.0
      %827 = vmatpush1.msra.mxu0 0.0
      %828 = vmatprep.subr.mxu0 0.0
      %829 = vmatpush1.msra.mxu0 0.0
      %830 = vmatprep.subr.mxu0 0.0
      %831 = vmatpush1.msra.mxu0 0.0
      %832 = vmatprep.subr.mxu0 0.0
      %833 = vmatpush1.msra.mxu0 0.0
      %834 = vmatprep.subr.mxu0 0.0
      %835 = vmatpush1.msra.mxu0 0.0
      %836 = vmatprep.subr.mxu0 0.0
      %837 = vmatpush1.msra.mxu0 0.0
      %838 = vmatprep.subr.mxu0 0.0
      %839 = vmatpush1.msra.mxu0 0.0
      %840 = vmatprep.subr.mxu0 0.0
      %841 = vmatpush1.msra.mxu0 0.0
      %842 = vmatprep.subr.mxu0 0.0
      %843 = vmatpush1.msra.mxu0 0.0
      %844 = vmatprep.mubr.f32.mxu0 0.0
      %845 = vmatmul.mubr.f32.gmra.mrb[0].mxu0 %v742
      %v846 = vpop.f32.mrb[0].mxu0
      %v847 = vadd.f32 0.0, %v846
      %v848 = vpop.f32.mrb[0].mxu0
      %849 = vmatprep.mubr.f32.mxu0 0.0
      %850 = vmatmul.mubr.f32.gmra.mrb[0].mxu0 %v745
      %v851 = vpop.f32.mrb[0].mxu0
      %v852 = vadd.f32 0.0, %v851
      %v853 = vpop.f32.mrb[0].mxu0
      %854 = vmatprep.mubr.f32.mxu0 0.0
      %855 = vmatmul.mubr.f32.gmra.mrb[0].mxu0 %v748
      %v856 = vpop.f32.mrb[0].mxu0
      %v857 = vadd.f32 0.0, %v856
      %v858 = vpop.f32.mrb[0].mxu0
      %859 = vmatprep.mubr.f32.mxu0 0.0
      %860 = vmatmul.mubr.f32.gmra.mrb[0].mxu0 %v751
      %v861 = vpop.f32.mrb[0].mxu0
      %v862 = vadd.f32 0.0, %v861
      %v863 = vpop.f32.mrb[0].mxu0
      %864 = vmatprep.mubr.f32.mxu0 0.0
      %865 = vmatmul.mubr.f32.gmra.mrb[0].mxu0 %v754
      %v866 = vpop.f32.mrb[0].mxu0
      %v867 = vadd.f32 0.0, %v866
      %v868 = vpop.f32.mrb[0].mxu0
      %869 = vmatprep.mubr.f32.mxu0 0.0
      %870 = vmatmul.mubr.f32.gmra.mrb[0].mxu0 %v757
      %v871 = vpop.f32.mrb[0].mxu0
      %v872 = vadd.f32 0.0, %v871
      %v873 = vpop.f32.mrb[0].mxu0
      %874 = vmatprep.mubr.f32.mxu0 0.0
      %875 = vmatmul.mubr.f32.gmra.mrb[0].mxu0 %v760
      %v876 = vpop.f32.mrb[0].mxu0
      %v877 = vadd.f32 0.0, %v876
      %v878 = vpop.f32.mrb[0].mxu0
      %879 = vmatprep.mubr.f32.mxu0 0.0
      %880 = vmatmul.mubr.f32.gmra.mrb[0].mxu0 %v763
      %v881 = vpop.f32.mrb[0].mxu0
      %v882 = vadd.f32 0.0, %v881
      %v883 = vpop.f32.mrb[0].mxu0
      %884 = vmatprep.mubr.f32.mxu0 0.0
      %885 = vmatmul.mubr.f32.gmra.mrb[0].mxu0 %v766
      %v886 = vpop.f32.mrb[0].mxu0
      %v887 = vadd.f32 0.0, %v886
      %v888 = vpop.f32.mrb[0].mxu0
      %889 = vmatprep.mubr.f32.mxu0 0.0
      %890 = vmatmul.mubr.f32.gmra.mrb[0].mxu0 %v769
      %v891 = vpop.f32.mrb[0].mxu0
      %v892 = vadd.f32 0.0, %v891
      %v893 = vpop.f32.mrb[0].mxu0
      %894 = vmatprep.mubr.f32.mxu0 0.0
      %895 = vmatmul.mubr.f32.gmra.mrb[0].mxu0 %v772
      %v896 = vpop.f32.mrb[0].mxu0
      %v897 = vadd.f32 0.0, %v896
      %v898 = vpop.f32.mrb[0].mxu0
      %899 = vmatprep.mubr.f32.mxu0 0.0
      %900 = vmatmul.mubr.f32.gmra.mrb[0].mxu0 %v775
      %v901 = vpop.f32.mrb[0].mxu0
      %v902 = vadd.f32 0.0, %v901
      %v903 = vpop.f32.mrb[0].mxu0
      %904 = vdwg.mxu0
      %v905 = vadd.f32 %v520, %v847
      %v906 = vadd.f32 %v525, %v852
      %v907 = vadd.f32 %v530, %v857
      %v908 = vadd.f32 %v535, %v862
      %v909 = vadd.f32 %v540, %v867
      %v910 = vadd.f32 %v545, %v872
      %v911 = vadd.f32 %v550, %v877
      %v912 = vadd.f32 %v555, %v882
      %v913 = vadd.f32 %v560, %v887
      %v914 = vadd.f32 %v565, %v892
      %v915 = vadd.f32 %v570, %v897
      %v916 = vadd.f32 %v575, %v902
      %v918 = vsel %vm248, %v221, 0
      %v920 = vsel %vm285, %v740, 0
      %922 = vmatprep.subr.mxu0 0.0
      %923 = vmatpush1.msra.mxu0 %v729
      %924 = vmatprep.subr.mxu0 0.0
      %925 = vmatpush1.msra.mxu0 %v730
      %926 = vmatprep.subr.mxu0 0.0
      %927 = vmatpush1.msra.mxu0 %v731
      %928 = vmatprep.subr.mxu0 0.0
      %929 = vmatpush1.msra.mxu0 %v732
      %930 = vmatprep.subr.mxu0 0.0
      %931 = vmatpush1.msra.mxu0 %v733
      %932 = vmatprep.subr.mxu0 0.0
      %933 = vmatpush1.msra.mxu0 %v734
      %934 = vmatprep.subr.mxu0 0.0
      %935 = vmatpush1.msra.mxu0 %v735
      %936 = vmatprep.subr.mxu0 0.0
      %937 = vmatpush1.msra.mxu0 %v736
      %938 = vmatprep.subr.mxu0 0.0
      %939 = vmatpush1.msra.mxu0 %v737
      %940 = vmatprep.subr.mxu0 0.0
      %941 = vmatpush1.msra.mxu0 %v738
      %942 = vmatprep.subr.mxu0 0.0
      %943 = vmatpush1.msra.mxu0 %v739
      %944 = vmatprep.subr.mxu0 0.0
      %945 = vmatpush1.msra.mxu0 %v920
      %946 = vmatprep.subr.mxu0 0.0
      %947 = vmatpush1.msra.mxu0 0.0
      %948 = vmatprep.subr.mxu0 0.0
      %949 = vmatpush1.msra.mxu0 0.0
      %950 = vmatprep.subr.mxu0 0.0
      %951 = vmatpush1.msra.mxu0 0.0
      %952 = vmatprep.subr.mxu0 0.0
      %953 = vmatpush1.msra.mxu0 0.0
      %954 = vmatprep.subr.mxu0 0.0
      %955 = vmatpush1.msra.mxu0 0.0
      %956 = vmatprep.subr.mxu0 0.0
      %957 = vmatpush1.msra.mxu0 0.0
      %958 = vmatprep.subr.mxu0 0.0
      %959 = vmatpush1.msra.mxu0 0.0
      %960 = vmatprep.subr.mxu0 0.0
      %961 = vmatpush1.msra.mxu0 0.0
      %962 = vmatprep.subr.mxu0 0.0
      %963 = vmatpush1.msra.mxu0 0.0
      %964 = vmatprep.subr.mxu0 0.0
      %965 = vmatpush1.msra.mxu0 0.0
      %966 = vmatprep.subr.mxu0 0.0
      %967 = vmatpush1.msra.mxu0 0.0
      %968 = vmatprep.subr.mxu0 0.0
      %969 = vmatpush1.msra.mxu0 0.0
      %970 = vmatprep.subr.mxu0 0.0
      %971 = vmatpush1.msra.mxu0 0.0
      %972 = vmatprep.subr.mxu0 0.0
      %973 = vmatpush1.msra.mxu0 0.0
      %974 = vmatprep.subr.mxu0 0.0
      %975 = vmatpush1.msra.mxu0 0.0
      %976 = vmatprep.subr.mxu0 0.0
      %977 = vmatpush1.msra.mxu0 0.0
      %978 = vmatprep.subr.mxu0 0.0
      %979 = vmatpush1.msra.mxu0 0.0
      %980 = vmatprep.subr.mxu0 0.0
      %981 = vmatpush1.msra.mxu0 0.0
      %982 = vmatprep.subr.mxu0 0.0
      %983 = vmatpush1.msra.mxu0 0.0
      %984 = vmatprep.subr.mxu0 0.0
      %985 = vmatpush1.msra.mxu0 0.0
      %986 = vmatprep.mubr.f32.mxu0 0.0
      %987 = vmatmul.mubr.f32.gmra.mrb[0].mxu0 %v918
      %v988 = vpop.f32.mrb[0].mxu0
      %v989 = vadd.f32 0.0, %v988
      %v990 = vpop.f32.mrb[0].mxu0
      %991 = vdwg.mxu0
      %v992 = vadd.f32 %v725, %v989
      %s993 = scalar_lea.vmem %s165, 288
      %v994 = vld [vmem:[%s993] sm:$0xff]
      %v995 = vld [vmem:[%s993 + $0x8] sm:$0xff]
      %v996 = vld [vmem:[%s993 + $0x10] sm:$0xff]
      %v997 = vld [vmem:[%s993 + $0x18] sm:$0xff]
      %v998 = vld [vmem:[%s993 + $0x20] sm:$0xff]
      %v999 = vld [vmem:[%s993 + $0x28] sm:$0xff]
      %v1000 = vld [vmem:[%s993 + $0x30] sm:$0xff]
      %v1001 = vld [vmem:[%s993 + $0x38] sm:$0xff]
      %v1002 = vld [vmem:[%s993 + $0x40] sm:$0xff]
      %v1003 = vld [vmem:[%s993 + $0x48] sm:$0xff]
      %v1004 = vld [vmem:[%s993 + $0x50] sm:$0xff]
      %v1005 = vld [vmem:[%s993 + $0x58] sm:$0x3]
      %v1007 = vsel %vm248, %v994, 0
      %v1010 = vsel %vm248, %v995, 0
      %v1013 = vsel %vm248, %v996, 0
      %v1016 = vsel %vm248, %v997, 0
      %v1019 = vsel %vm248, %v998, 0
      %v1022 = vsel %vm248, %v999, 0
      %v1025 = vsel %vm248, %v1000, 0
      %v1028 = vsel %vm248, %v1001, 0
      %v1031 = vsel %vm248, %v1002, 0
      %v1034 = vsel %vm248, %v1003, 0
      %v1037 = vsel %vm248, %v1004, 0
      %v1040 = vsel %vm248, %v1005, 0
      %v1043 = vsel %vm285, %v218, 0
      %1045 = vmatprep.subr.mxu0 0.0
      %1046 = vmatpush1.msra.mxu0 %v207
      %1047 = vmatprep.subr.mxu0 0.0
      %1048 = vmatpush1.msra.mxu0 %v208
      %1049 = vmatprep.subr.mxu0 0.0
      %1050 = vmatpush1.msra.mxu0 %v209
      %1051 = vmatprep.subr.mxu0 0.0
      %1052 = vmatpush1.msra.mxu0 %v210
      %1053 = vmatprep.subr.mxu0 0.0
      %1054 = vmatpush1.msra.mxu0 %v211
      %1055 = vmatprep.subr.mxu0 0.0
      %1056 = vmatpush1.msra.mxu0 %v212
      %1057 = vmatprep.subr.mxu0 0.0
      %1058 = vmatpush1.msra.mxu0 %v213
      %1059 = vmatprep.subr.mxu0 0.0
      %1060 = vmatpush1.msra.mxu0 %v214
      %1061 = vmatprep.subr.mxu0 0.0
      %1062 = vmatpush1.msra.mxu0 %v215
      %1063 = vmatprep.subr.mxu0 0.0
      %1064 = vmatpush1.msra.mxu0 %v216
      %1065 = vmatprep.subr.mxu0 0.0
      %1066 = vmatpush1.msra.mxu0 %v217
      %1067 = vmatprep.subr.mxu0 0.0
      %1068 = vmatpush1.msra.mxu0 %v1043
      %1069 = vmatprep.subr.mxu0 0.0
      %1070 = vmatpush1.msra.mxu0 0.0
      %1071 = vmatprep.subr.mxu0 0.0
      %1072 = vmatpush1.msra.mxu0 0.0
      %1073 = vmatprep.subr.mxu0 0.0
      %1074 = vmatpush1.msra.mxu0 0.0
      %1075 = vmatprep.subr.mxu0 0.0
      %1076 = vmatpush1.msra.mxu0 0.0
      %1077 = vmatprep.subr.mxu0 0.0
      %1078 = vmatpush1.msra.mxu0 0.0
      %1079 = vmatprep.subr.mxu0 0.0
      %1080 = vmatpush1.msra.mxu0 0.0
      %1081 = vmatprep.subr.mxu0 0.0
      %1082 = vmatpush1.msra.mxu0 0.0
      %1083 = vmatprep.subr.mxu0 0.0
      %1084 = vmatpush1.msra.mxu0 0.0
      %1085 = vmatprep.subr.mxu0 0.0
      %1086 = vmatpush1.msra.mxu0 0.0
      %1087 = vmatprep.subr.mxu0 0.0
      %1088 = vmatpush1.msra.mxu0 0.0
      %1089 = vmatprep.subr.mxu0 0.0
      %1090 = vmatpush1.msra.mxu0 0.0
      %1091 = vmatprep.subr.mxu0 0.0
      %1092 = vmatpush1.msra.mxu0 0.0
      %1093 = vmatprep.subr.mxu0 0.0
      %1094 = vmatpush1.msra.mxu0 0.0
      %1095 = vmatprep.subr.mxu0 0.0
      %1096 = vmatpush1.msra.mxu0 0.0
      %1097 = vmatprep.subr.mxu0 0.0
      %1098 = vmatpush1.msra.mxu0 0.0
      %1099 = vmatprep.subr.mxu0 0.0
      %1100 = vmatpush1.msra.mxu0 0.0
      %1101 = vmatprep.subr.mxu0 0.0
      %1102 = vmatpush1.msra.mxu0 0.0
      %1103 = vmatprep.subr.mxu0 0.0
      %1104 = vmatpush1.msra.mxu0 0.0
      %1105 = vmatprep.subr.mxu0 0.0
      %1106 = vmatpush1.msra.mxu0 0.0
      %1107 = vmatprep.subr.mxu0 0.0
      %1108 = vmatpush1.msra.mxu0 0.0
      %1109 = vmatprep.mubr.f32.mxu0 0.0
      %1110 = vmatmul.mubr.f32.gmra.mrb[0].mxu0 %v1007
      %v1111 = vpop.f32.mrb[0].mxu0
      %v1112 = vadd.f32 0.0, %v1111
      %v1113 = vpop.f32.mrb[0].mxu0
      %1114 = vmatprep.mubr.f32.mxu0 0.0
      %1115 = vmatmul.mubr.f32.gmra.mrb[0].mxu0 %v1010
      %v1116 = vpop.f32.mrb[0].mxu0
      %v1117 = vadd.f32 0.0, %v1116
      %v1118 = vpop.f32.mrb[0].mxu0
      %1119 = vmatprep.mubr.f32.mxu0 0.0
      %1120 = vmatmul.mubr.f32.gmra.mrb[0].mxu0 %v1013
      %v1121 = vpop.f32.mrb[0].mxu0
      %v1122 = vadd.f32 0.0, %v1121
      %v1123 = vpop.f32.mrb[0].mxu0
      %1124 = vmatprep.mubr.f32.mxu0 0.0
      %1125 = vmatmul.mubr.f32.gmra.mrb[0].mxu0 %v1016
      %v1126 = vpop.f32.mrb[0].mxu0
      %v1127 = vadd.f32 0.0, %v1126
      %v1128 = vpop.f32.mrb[0].mxu0
      %1129 = vmatprep.mubr.f32.mxu0 0.0
      %1130 = vmatmul.mubr.f32.gmra.mrb[0].mxu0 %v1019
      %v1131 = vpop.f32.mrb[0].mxu0
      %v1132 = vadd.f32 0.0, %v1131
      %v1133 = vpop.f32.mrb[0].mxu0
      %1134 = vmatprep.mubr.f32.mxu0 0.0
      %1135 = vmatmul.mubr.f32.gmra.mrb[0].mxu0 %v1022
      %v1136 = vpop.f32.mrb[0].mxu0
      %v1137 = vadd.f32 0.0, %v1136
      %v1138 = vpop.f32.mrb[0].mxu0
      %1139 = vmatprep.mubr.f32.mxu0 0.0
      %1140 = vmatmul.mubr.f32.gmra.mrb[0].mxu0 %v1025
      %v1141 = vpop.f32.mrb[0].mxu0
      %v1142 = vadd.f32 0.0, %v1141
      %v1143 = vpop.f32.mrb[0].mxu0
      %1144 = vmatprep.mubr.f32.mxu0 0.0
      %1145 = vmatmul.mubr.f32.gmra.mrb[0].mxu0 %v1028
      %v1146 = vpop.f32.mrb[0].mxu0
      %v1147 = vadd.f32 0.0, %v1146
      %v1148 = vpop.f32.mrb[0].mxu0
      %1149 = vmatprep.mubr.f32.mxu0 0.0
      %1150 = vmatmul.mubr.f32.gmra.mrb[0].mxu0 %v1031
      %v1151 = vpop.f32.mrb[0].mxu0
      %v1152 = vadd.f32 0.0, %v1151
      %v1153 = vpop.f32.mrb[0].mxu0
      %1154 = vmatprep.mubr.f32.mxu0 0.0
      %1155 = vmatmul.mubr.f32.gmra.mrb[0].mxu0 %v1034
      %v1156 = vpop.f32.mrb[0].mxu0
      %v1157 = vadd.f32 0.0, %v1156
      %v1158 = vpop.f32.mrb[0].mxu0
      %1159 = vmatprep.mubr.f32.mxu0 0.0
      %1160 = vmatmul.mubr.f32.gmra.mrb[0].mxu0 %v1037
      %v1161 = vpop.f32.mrb[0].mxu0
      %v1162 = vadd.f32 0.0, %v1161
      %v1163 = vpop.f32.mrb[0].mxu0
      %1164 = vmatprep.mubr.f32.mxu0 0.0
      %1165 = vmatmul.mubr.f32.gmra.mrb[0].mxu0 %v1040
      %v1166 = vpop.f32.mrb[0].mxu0
      %v1167 = vadd.f32 0.0, %v1166
      %v1168 = vpop.f32.mrb[0].mxu0
      %1169 = vdwg.mxu0
      %v1170 = vadd.f32 %v905, %v1112
      %v1171 = vadd.f32 %v906, %v1117
      %v1172 = vadd.f32 %v907, %v1122
      %v1173 = vadd.f32 %v908, %v1127
      %v1174 = vadd.f32 %v909, %v1132
      %v1175 = vadd.f32 %v910, %v1137
      %v1176 = vadd.f32 %v911, %v1142
      %v1177 = vadd.f32 %v912, %v1147
      %v1178 = vadd.f32 %v913, %v1152
      %v1179 = vadd.f32 %v914, %v1157
      %v1180 = vadd.f32 %v915, %v1162
      %v1181 = vadd.f32 %v916, %v1167
      %v1183 = vsel %vm248, %v222, 0
      %v1185 = vsel %vm285, %v1005, 0
      %1187 = vmatprep.subr.mxu0 0.0
      %1188 = vmatpush1.msra.mxu0 %v994
      %1189 = vmatprep.subr.mxu0 0.0
      %1190 = vmatpush1.msra.mxu0 %v995
      %1191 = vmatprep.subr.mxu0 0.0
      %1192 = vmatpush1.msra.mxu0 %v996
      %1193 = vmatprep.subr.mxu0 0.0
      %1194 = vmatpush1.msra.mxu0 %v997
      %1195 = vmatprep.subr.mxu0 0.0
      %1196 = vmatpush1.msra.mxu0 %v998
      %1197 = vmatprep.subr.mxu0 0.0
      %1198 = vmatpush1.msra.mxu0 %v999
      %1199 = vmatprep.subr.mxu0 0.0
      %1200 = vmatpush1.msra.mxu0 %v1000
      %1201 = vmatprep.subr.mxu0 0.0
      %1202 = vmatpush1.msra.mxu0 %v1001
      %1203 = vmatprep.subr.mxu0 0.0
      %1204 = vmatpush1.msra.mxu0 %v1002
      %1205 = vmatprep.subr.mxu0 0.0
      %1206 = vmatpush1.msra.mxu0 %v1003
      %1207 = vmatprep.subr.mxu0 0.0
      %1208 = vmatpush1.msra.mxu0 %v1004
      %1209 = vmatprep.subr.mxu0 0.0
      %1210 = vmatpush1.msra.mxu0 %v1185
      %1211 = vmatprep.subr.mxu0 0.0
      %1212 = vmatpush1.msra.mxu0 0.0
      %1213 = vmatprep.subr.mxu0 0.0
      %1214 = vmatpush1.msra.mxu0 0.0
      %1215 = vmatprep.subr.mxu0 0.0
      %1216 = vmatpush1.msra.mxu0 0.0
      %1217 = vmatprep.subr.mxu0 0.0
      %1218 = vmatpush1.msra.mxu0 0.0
      %1219 = vmatprep.subr.mxu0 0.0
      %1220 = vmatpush1.msra.mxu0 0.0
      %1221 = vmatprep.subr.mxu0 0.0
      %1222 = vmatpush1.msra.mxu0 0.0
      %1223 = vmatprep.subr.mxu0 0.0
      %1224 = vmatpush1.msra.mxu0 0.0
      %1225 = vmatprep.subr.mxu0 0.0
      %1226 = vmatpush1.msra.mxu0 0.0
      %1227 = vmatprep.subr.mxu0 0.0
      %1228 = vmatpush1.msra.mxu0 0.0
      %1229 = vmatprep.subr.mxu0 0.0
      %1230 = vmatpush1.msra.mxu0 0.0
      %1231 = vmatprep.subr.mxu0 0.0
      %1232 = vmatpush1.msra.mxu0 0.0
      %1233 = vmatprep.subr.mxu0 0.0
      %1234 = vmatpush1.msra.mxu0 0.0
      %1235 = vmatprep.subr.mxu0 0.0
      %1236 = vmatpush1.msra.mxu0 0.0
      %1237 = vmatprep.subr.mxu0 0.0
      %1238 = vmatpush1.msra.mxu0 0.0
      %1239 = vmatprep.subr.mxu0 0.0
      %1240 = vmatpush1.msra.mxu0 0.0
      %1241 = vmatprep.subr.mxu0 0.0
      %1242 = vmatpush1.msra.mxu0 0.0
      %1243 = vmatprep.subr.mxu0 0.0
      %1244 = vmatpush1.msra.mxu0 0.0
      %1245 = vmatprep.subr.mxu0 0.0
      %1246 = vmatpush1.msra.mxu0 0.0
      %1247 = vmatprep.subr.mxu0 0.0
      %1248 = vmatpush1.msra.mxu0 0.0
      %1249 = vmatprep.subr.mxu0 0.0
      %1250 = vmatpush1.msra.mxu0 0.0
      %1251 = vmatprep.mubr.f32.mxu0 0.0
      %1252 = vmatmul.mubr.f32.gmra.mrb[0].mxu0 %v1183
      %v1253 = vpop.f32.mrb[0].mxu0
      %v1254 = vadd.f32 0.0, %v1253
      %v1255 = vpop.f32.mrb[0].mxu0
      %1256 = vdwg.mxu0
      %v1257 = vadd.f32 %v992, %v1254
      %1259 = vset.pattern.permute.xlu0 0
      %1260 = vperm.xlu0 %1259, %v1170
      %v1261 = vpop.permute.xlu0 %1260
      %1264 = vset.pattern.permute.xlu0 0
      %1265 = vperm.xlu0 %1264, %v1171
      %v1266 = vpop.permute.xlu0 %1265
      %1269 = vset.pattern.permute.xlu0 0
      %1270 = vperm.xlu0 %1269, %v1172
      %v1271 = vpop.permute.xlu0 %1270
      %1274 = vset.pattern.permute.xlu0 0
      %1275 = vperm.xlu0 %1274, %v1173
      %v1276 = vpop.permute.xlu0 %1275
      %1279 = vset.pattern.permute.xlu0 0
      %1280 = vperm.xlu0 %1279, %v1174
      %v1281 = vpop.permute.xlu0 %1280
      %1284 = vset.pattern.permute.xlu0 0
      %1285 = vperm.xlu0 %1284, %v1175
      %v1286 = vpop.permute.xlu0 %1285
      %1289 = vset.pattern.permute.xlu0 0
      %1290 = vperm.xlu0 %1289, %v1176
      %v1291 = vpop.permute.xlu0 %1290
      %1294 = vset.pattern.permute.xlu0 0
      %1295 = vperm.xlu0 %1294, %v1177
      %v1296 = vpop.permute.xlu0 %1295
      %1299 = vset.pattern.permute.xlu0 0
      %1300 = vperm.xlu0 %1299, %v1178
      %v1301 = vpop.permute.xlu0 %1300
      %1304 = vset.pattern.permute.xlu0 0
      %1305 = vperm.xlu0 %1304, %v1179
      %v1306 = vpop.permute.xlu0 %1305
      %1309 = vset.pattern.permute.xlu0 0
      %1310 = vperm.xlu0 %1309, %v1180
      %v1311 = vpop.permute.xlu0 %1310
      %1314 = vset.pattern.permute.xlu0 0
      %1315 = vperm.xlu0 %1314, %v1181
      %v1316 = vpop.permute.xlu0 %1315
      %v1318 = vlaneseq
      %v1319 = vshrl.u32 %v1318, 7
      %v1320 = vsub.s32 0, %v1319
      %v1321 = vrot.slane %v1257, %v1320
      %v1322 = vadd.f32 %v1261, %v1321
      %v1323 = vadd.f32 %v1266, %v1321
      %v1324 = vadd.f32 %v1271, %v1321
      %v1325 = vadd.f32 %v1276, %v1321
      %v1326 = vadd.f32 %v1281, %v1321
      %v1327 = vadd.f32 %v1286, %v1321
      %v1328 = vadd.f32 %v1291, %v1321
      %v1329 = vadd.f32 %v1296, %v1321
      %v1330 = vadd.f32 %v1301, %v1321
      %v1331 = vadd.f32 %v1306, %v1321
      %v1332 = vadd.f32 %v1311, %v1321
      %v1333 = vadd.f32 %v1316, %v1321
      %1334 = vst.msk [vmem:[%s170] sm:$0xff] %vm248, %v1322
      %1335 = vst.msk [vmem:[%s170 + $0x8] sm:$0xff] %vm248, %v1323
      %1336 = vst.msk [vmem:[%s170 + $0x10] sm:$0xff] %vm248, %v1324
      %1337 = vst.msk [vmem:[%s170 + $0x18] sm:$0xff] %vm248, %v1325
      %1338 = vst.msk [vmem:[%s170 + $0x20] sm:$0xff] %vm248, %v1326
      %1339 = vst.msk [vmem:[%s170 + $0x28] sm:$0xff] %vm248, %v1327
      %1340 = vst.msk [vmem:[%s170 + $0x30] sm:$0xff] %vm248, %v1328
      %1341 = vst.msk [vmem:[%s170 + $0x38] sm:$0xff] %vm248, %v1329
      %1342 = vst.msk [vmem:[%s170 + $0x40] sm:$0xff] %vm248, %v1330
      %1343 = vst.msk [vmem:[%s170 + $0x48] sm:$0xff] %vm248, %v1331
      %1344 = vst.msk [vmem:[%s170 + $0x50] sm:$0xff] %vm248, %v1332
      %vm1345 = vcmask 730112
      %1346 = vst.msk [vmem:[%s170 + $0x58] sm:$0x3] %vm1345, %v1333
      %1347 = vset.pattern.permute.xlu0 1
      %1348 = vperm.xlu0 %1347, %v1170
      %v1349 = vpop.permute.xlu0 %1348
      %1351 = vset.pattern.permute.xlu0 1
      %1352 = vperm.xlu0 %1351, %v1171
      %v1353 = vpop.permute.xlu0 %1352
      %1355 = vset.pattern.permute.xlu0 1
      %1356 = vperm.xlu0 %1355, %v1172
      %v1357 = vpop.permute.xlu0 %1356
      %1359 = vset.pattern.permute.xlu0 1
      %1360 = vperm.xlu0 %1359, %v1173
      %v1361 = vpop.permute.xlu0 %1360
      %1363 = vset.pattern.permute.xlu0 1
      %1364 = vperm.xlu0 %1363, %v1174
      %v1365 = vpop.permute.xlu0 %1364
      %1367 = vset.pattern.permute.xlu0 1
      %1368 = vperm.xlu0 %1367, %v1175
      %v1369 = vpop.permute.xlu0 %1368
      %1371 = vset.pattern.permute.xlu0 1
      %1372 = vperm.xlu0 %1371, %v1176
      %v1373 = vpop.permute.xlu0 %1372
      %1375 = vset.pattern.permute.xlu0 1
      %1376 = vperm.xlu0 %1375, %v1177
      %v1377 = vpop.permute.xlu0 %1376
      %1379 = vset.pattern.permute.xlu0 1
      %1380 = vperm.xlu0 %1379, %v1178
      %v1381 = vpop.permute.xlu0 %1380
      %1383 = vset.pattern.permute.xlu0 1
      %1384 = vperm.xlu0 %1383, %v1179
      %v1385 = vpop.permute.xlu0 %1384
      %1387 = vset.pattern.permute.xlu0 1
      %1388 = vperm.xlu0 %1387, %v1180
      %v1389 = vpop.permute.xlu0 %1388
      %1391 = vset.pattern.permute.xlu0 1
      %1392 = vperm.xlu0 %1391, %v1181
      %v1393 = vpop.permute.xlu0 %1392
      %v1395 = vlaneseq
      %v1396 = vshrl.u32 %v1395, 7
      %v1397 = vsub.s32 1, %v1396
      %v1398 = vrot.slane %v1257, %v1397
      %v1399 = vadd.f32 %v1349, %v1398
      %v1400 = vadd.f32 %v1353, %v1398
      %v1401 = vadd.f32 %v1357, %v1398
      %v1402 = vadd.f32 %v1361, %v1398
      %v1403 = vadd.f32 %v1365, %v1398
      %v1404 = vadd.f32 %v1369, %v1398
      %v1405 = vadd.f32 %v1373, %v1398
      %v1406 = vadd.f32 %v1377, %v1398
      %v1407 = vadd.f32 %v1381, %v1398
      %v1408 = vadd.f32 %v1385, %v1398
      %v1409 = vadd.f32 %v1389, %v1398
      %v1410 = vadd.f32 %v1393, %v1398
      %s1411 = scalar_lea.vmem %s170, 96
      %1412 = vst.msk [vmem:[%s1411] sm:$0xff] %vm248, %v1399
      %1413 = vst.msk [vmem:[%s1411 + $0x8] sm:$0xff] %vm248, %v1400
      %1414 = vst.msk [vmem:[%s1411 + $0x10] sm:$0xff] %vm248, %v1401
      %1415 = vst.msk [vmem:[%s1411 + $0x18] sm:$0xff] %vm248, %v1402
      %1416 = vst.msk [vmem:[%s1411 + $0x20] sm:$0xff] %vm248, %v1403
      %1417 = vst.msk [vmem:[%s1411 + $0x28] sm:$0xff] %vm248, %v1404
      %1418 = vst.msk [vmem:[%s1411 + $0x30] sm:$0xff] %vm248, %v1405
      %1419 = vst.msk [vmem:[%s1411 + $0x38] sm:$0xff] %vm248, %v1406
      %1420 = vst.msk [vmem:[%s1411 + $0x40] sm:$0xff] %vm248, %v1407
      %1421 = vst.msk [vmem:[%s1411 + $0x48] sm:$0xff] %vm248, %v1408
      %1422 = vst.msk [vmem:[%s1411 + $0x50] sm:$0xff] %vm248, %v1409
      %1423 = vst.msk [vmem:[%s1411 + $0x58] sm:$0x3] %vm1345, %v1410
      %1424 = vset.pattern.permute.xlu0 2
      %1425 = vperm.xlu0 %1424, %v1170
      %v1426 = vpop.permute.xlu0 %1425
      %1428 = vset.pattern.permute.xlu0 2
      %1429 = vperm.xlu0 %1428, %v1171
      %v1430 = vpop.permute.xlu0 %1429
      %1432 = vset.pattern.permute.xlu0 2
      %1433 = vperm.xlu0 %1432, %v1172
      %v1434 = vpop.permute.xlu0 %1433
      %1436 = vset.pattern.permute.xlu0 2
      %1437 = vperm.xlu0 %1436, %v1173
      %v1438 = vpop.permute.xlu0 %1437
      %1440 = vset.pattern.permute.xlu0 2
      %1441 = vperm.xlu0 %1440, %v1174
      %v1442 = vpop.permute.xlu0 %1441
      %1444 = vset.pattern.permute.xlu0 2
      %1445 = vperm.xlu0 %1444, %v1175
      %v1446 = vpop.permute.xlu0 %1445
      %1448 = vset.pattern.permute.xlu0 2
      %1449 = vperm.xlu0 %1448, %v1176
      %v1450 = vpop.permute.xlu0 %1449
      %1452 = vset.pattern.permute.xlu0 2
      %1453 = vperm.xlu0 %1452, %v1177
      %v1454 = vpop.permute.xlu0 %1453
      %1456 = vset.pattern.permute.xlu0 2
      %1457 = vperm.xlu0 %1456, %v1178
      %v1458 = vpop.permute.xlu0 %1457
      %1460 = vset.pattern.permute.xlu0 2
      %1461 = vperm.xlu0 %1460, %v1179
      %v1462 = vpop.permute.xlu0 %1461
      %1464 = vset.pattern.permute.xlu0 2
      %1465 = vperm.xlu0 %1464, %v1180
      %v1466 = vpop.permute.xlu0 %1465
      %1468 = vset.pattern.permute.xlu0 2
      %1469 = vperm.xlu0 %1468, %v1181
      %v1470 = vpop.permute.xlu0 %1469
      %v1472 = vlaneseq
      %v1473 = vshrl.u32 %v1472, 7
      %v1474 = vsub.s32 2, %v1473
      %v1475 = vrot.slane %v1257, %v1474
      %v1476 = vadd.f32 %v1426, %v1475
      %v1477 = vadd.f32 %v1430, %v1475
      %v1478 = vadd.f32 %v1434, %v1475
      %v1479 = vadd.f32 %v1438, %v1475
      %v1480 = vadd.f32 %v1442, %v1475
      %v1481 = vadd.f32 %v1446, %v1475
      %v1482 = vadd.f32 %v1450, %v1475
      %v1483 = vadd.f32 %v1454, %v1475
      %v1484 = vadd.f32 %v1458, %v1475
      %v1485 = vadd.f32 %v1462, %v1475
      %v1486 = vadd.f32 %v1466, %v1475
      %v1487 = vadd.f32 %v1470, %v1475
      %s1488 = scalar_lea.vmem %s170, 192
      %1489 = vst.msk [vmem:[%s1488] sm:$0xff] %vm248, %v1476
      %1490 = vst.msk [vmem:[%s1488 + $0x8] sm:$0xff] %vm248, %v1477
      %1491 = vst.msk [vmem:[%s1488 + $0x10] sm:$0xff] %vm248, %v1478
      %1492 = vst.msk [vmem:[%s1488 + $0x18] sm:$0xff] %vm248, %v1479
      %1493 = vst.msk [vmem:[%s1488 + $0x20] sm:$0xff] %vm248, %v1480
      %1494 = vst.msk [vmem:[%s1488 + $0x28] sm:$0xff] %vm248, %v1481
      %1495 = vst.msk [vmem:[%s1488 + $0x30] sm:$0xff] %vm248, %v1482
      %1496 = vst.msk [vmem:[%s1488 + $0x38] sm:$0xff] %vm248, %v1483
      %1497 = vst.msk [vmem:[%s1488 + $0x40] sm:$0xff] %vm248, %v1484
      %1498 = vst.msk [vmem:[%s1488 + $0x48] sm:$0xff] %vm248, %v1485
      %1499 = vst.msk [vmem:[%s1488 + $0x50] sm:$0xff] %vm248, %v1486
      %1500 = vst.msk [vmem:[%s1488 + $0x58] sm:$0x3] %vm1345, %v1487
      %1501 = vset.pattern.permute.xlu0 3
      %1502 = vperm.xlu0 %1501, %v1170
      %v1503 = vpop.permute.xlu0 %1502
      %1505 = vset.pattern.permute.xlu0 3
      %1506 = vperm.xlu0 %1505, %v1171
      %v1507 = vpop.permute.xlu0 %1506
      %1509 = vset.pattern.permute.xlu0 3
      %1510 = vperm.xlu0 %1509, %v1172
      %v1511 = vpop.permute.xlu0 %1510
      %1513 = vset.pattern.permute.xlu0 3
      %1514 = vperm.xlu0 %1513, %v1173
      %v1515 = vpop.permute.xlu0 %1514
      %1517 = vset.pattern.permute.xlu0 3
      %1518 = vperm.xlu0 %1517, %v1174
      %v1519 = vpop.permute.xlu0 %1518
      %1521 = vset.pattern.permute.xlu0 3
      %1522 = vperm.xlu0 %1521, %v1175
      %v1523 = vpop.permute.xlu0 %1522
      %1525 = vset.pattern.permute.xlu0 3
      %1526 = vperm.xlu0 %1525, %v1176
      %v1527 = vpop.permute.xlu0 %1526
      %1529 = vset.pattern.permute.xlu0 3
      %1530 = vperm.xlu0 %1529, %v1177
      %v1531 = vpop.permute.xlu0 %1530
      %1533 = vset.pattern.permute.xlu0 3
      %1534 = vperm.xlu0 %1533, %v1178
      %v1535 = vpop.permute.xlu0 %1534
      %1537 = vset.pattern.permute.xlu0 3
      %1538 = vperm.xlu0 %1537, %v1179
      %v1539 = vpop.permute.xlu0 %1538
      %1541 = vset.pattern.permute.xlu0 3
      %1542 = vperm.xlu0 %1541, %v1180
      %v1543 = vpop.permute.xlu0 %1542
      %1545 = vset.pattern.permute.xlu0 3
      %1546 = vperm.xlu0 %1545, %v1181
      %v1547 = vpop.permute.xlu0 %1546
      %v1549 = vlaneseq
      %v1550 = vshrl.u32 %v1549, 7
      %v1551 = vsub.s32 3, %v1550
      %v1552 = vrot.slane %v1257, %v1551
      %v1553 = vadd.f32 %v1503, %v1552
      %v1554 = vadd.f32 %v1507, %v1552
      %v1555 = vadd.f32 %v1511, %v1552
      %v1556 = vadd.f32 %v1515, %v1552
      %v1557 = vadd.f32 %v1519, %v1552
      %v1558 = vadd.f32 %v1523, %v1552
      %v1559 = vadd.f32 %v1527, %v1552
      %v1560 = vadd.f32 %v1531, %v1552
      %v1561 = vadd.f32 %v1535, %v1552
      %v1562 = vadd.f32 %v1539, %v1552
      %v1563 = vadd.f32 %v1543, %v1552
      %v1564 = vadd.f32 %v1547, %v1552
      %s1565 = scalar_lea.vmem %s170, 288
      %1566 = vst.msk [vmem:[%s1565] sm:$0xff] %vm248, %v1553
      %1567 = vst.msk [vmem:[%s1565 + $0x8] sm:$0xff] %vm248, %v1554
      %1568 = vst.msk [vmem:[%s1565 + $0x10] sm:$0xff] %vm248, %v1555
      %1569 = vst.msk [vmem:[%s1565 + $0x18] sm:$0xff] %vm248, %v1556
      %1570 = vst.msk [vmem:[%s1565 + $0x20] sm:$0xff] %vm248, %v1557
      %1571 = vst.msk [vmem:[%s1565 + $0x28] sm:$0xff] %vm248, %v1558
      %1572 = vst.msk [vmem:[%s1565 + $0x30] sm:$0xff] %vm248, %v1559
      %1573 = vst.msk [vmem:[%s1565 + $0x38] sm:$0xff] %vm248, %v1560
      %1574 = vst.msk [vmem:[%s1565 + $0x40] sm:$0xff] %vm248, %v1561
      %1575 = vst.msk [vmem:[%s1565 + $0x48] sm:$0xff] %vm248, %v1562
      %1576 = vst.msk [vmem:[%s1565 + $0x50] sm:$0xff] %vm248, %v1563
      %1577 = vst.msk [vmem:[%s1565 + $0x58] sm:$0x3] %vm1345, %v1564
      %p1578 = scmp.lt.s32.totalorder %s14, 1
      %s1579 = scalar_select %p1578, %s14, 1
      %s1580 = smul.addr %s1579, 48
      %s1581 = smul.addr %s1580, 8
      %s1582 = scalar_lea.vmem %s3, %s1581
      // Predicated region
      $region33: #{e2e_block.1} parent=31 // pred_check
        %p1583 = pneg %p100
      $region34: #{e2e_block.1} parent=31 // pred_check_branch
        %1585 = sbr.rel (%p1583) target = $region36
      $region35: #{e2e_block.1} parent=31 // pred_region
        _
      $region36: #{e2e_block.1} parent=31 // pred_fallthru
        _
    $region32: #{e2e_block.1} parent=5 // pred_fallthru
      _
    %p1586 = scmp.le.s32.totalorder 2, %s9
    // Predicated region
    $region37: #{e2e_block.1} parent=5 // pred_check
      %p1587 = pneg %p1586
    $region38: #{e2e_block.1} parent=5 // pred_check_branch
      %1589 = sbr.rel (%p1587) target = $region40
    $region39: #{e2e_block.1} parent=5 // pred_region
      %s1590 = ssub.s32 %s9, 2
      // Predicated region
      $region41: #{e2e_block.1} parent=39 // pred_check
        %p1591 = pneg %p106
      $region42: #{e2e_block.1} parent=39 // pred_check_branch
        %1593 = sbr.rel (%p1591) target = $region44
      $region43: #{e2e_block.1} parent=39 // pred_region
        %p1594 = scmp.lt.s32.totalorder %s15, 1
        %s1595 = scalar_select %p1594, %s15, 1
        %s1596 = smul.addr %s1595, 48
        %s1597 = smul.addr %s1596, 8
        %s1598 = scalar_lea.vmem %s3, %s1597
      $region44: #{e2e_block.1} parent=39 // pred_fallthru
        _
    $region40: #{e2e_block.1} parent=5 // pred_fallthru
      _
  $region6: #{e2e_block.1} parent=0 // loop_footer
    %s13 = sadd.s32 1, %s9
  $region7: #{e2e_block.1} parent=0 // loop_footer_branch
    %8 = sbr.rel target = $region3
  $region8: #{e2e_block.1} parent=0 // loop_exit
    _

</llo_original>
